<compile_context>
chip_gen: v7x
topology: tpu7x:2x2x1
jax: 0.10.0
libtpu: 0.0.40
codegen_flags: <defaults>
</compile_context>

<pallas_src>
import functools

import jax
import jax.numpy as jnp
from jax.experimental import pallas as pl
from jax.experimental.pallas import tpu as pltpu


def _round_up(x, m):
    return (x + m - 1) // m * m


def _divisors_desc(x):
    return [d for d in range(x, 0, -1) if x % d == 0]


def _tpu_flavor():
    try:
        kind = jax.devices()[0].device_kind.lower()
    except Exception:
        kind = ""
    if "v5 lite" in kind or "v5e" in kind or "v5lite" in kind:
        return "v5e"
    if "v7" in kind:
        return "v7x"
    if "v6" in kind:
        return "v6e"
    return "other"


def _vmem_limit_bytes():
    cap = 64 * 1024 * 1024
    try:
        cap = int(pltpu.get_tpu_info().vmem_capacity_bytes)
    except Exception:
        pass
    return min(cap, 64 * 1024 * 1024)


def _bytes_per_pixel(cin, e_pad, cout_pad, im2col):
    """Rough per-output-pixel VMEM working-set estimate for one grid step."""
    b = cin * 2 * 2            # x block, bf16, double-buffered
    b += cout_pad * 2 * 2      # output block, bf16, double-buffered
    b += e_pad * 2 * 2         # h + padded-h intermediates (bf16)
    b += 9 * e_pad * 2 if im2col else 0   # im2col patch matrix (bf16)
    b += cout_pad * 4          # f32 matmul accumulator
    return int(b * 1.5)        # compiler temporaries / layout slack


def _choose_tiles(n, h, w, bpp, *, mxu_rows, num_cores, budget):
    """Pick (images per step, rows per step): fill the MXU with >= ~4*mxu_rows rows per
    grid step while one step's working set stays under `budget` bytes; only force >=2
    grid steps on parts with 2 TensorCores (v7x)."""
    th = next((d for d in _divisors_desc(h) if d * w * bpp <= budget), 1)
    rows_tile = th * w
    want_rows = max(4 * mxu_rows, 512)
    fit = max(1, budget // max(1, rows_tile * bpp))
    nb = 1
    for d in sorted(_divisors_desc(n)):
        if d > fit:
            break
        nb = d
        if d * rows_tile >= want_rows:
            break
    if num_cores > 1 and (n // nb) * (h // th) < num_cores:
        if nb > 1:
            nb = max(d for d in _divisors_desc(n) if d < nb)
        elif th > 1:
            th = max(d for d in _divisors_desc(h) if d < th)
    return nb, th


def _fused_heads_kernel(x_ref, halo_ref, w1_ref, b1_ref, w2_ref, b2_ref, o_ref, *, im2col):
    # x_ref   : (NB, TH, W, Cin)     bf16   core rows of the H tile
    # halo_ref: (NB, 2, W, Cin)      bf16   row above / below the tile (replicated at borders)
    # w1_ref  : (Cin, E_pad)         bf16
    # b1_ref  : (1, E_pad)           f32
    # w2_ref  : (9*E_pad, Cout_pad)  bf16   if im2col else (9, E_pad, Cout_pad)
    # b2_ref  : (1, Cout_pad)        f32
    # o_ref   : (NB, TH, W, Cout_pad) bf16
    nb, th, W, cin = x_ref.shape
    e_pad = w1_ref.shape[1]
    cout_pad = b2_ref.shape[1]
    m = nb * th * W

    def conv1(rows):  # (rows, Cin) bf16 -> (rows, E_pad) bf16 (bias + LeakyReLU applied)
        hh = jnp.dot(rows, w1_ref[...], preferred_element_type=jnp.float32)
        hh = hh + b1_ref[...]
        hh = jnp.maximum(hh, 0.2 * hh)          # LeakyReLU(0.2) in f32
        return hh.astype(jnp.bfloat16)          # cast once; pad/taps run on bf16

    h_core = conv1(x_ref[...].reshape(m, cin)).reshape(nb, th, W, e_pad)
    h_halo = conv1(halo_ref[...].reshape(nb * 2 * W, cin)).reshape(nb, 2, W, e_pad)

    # H padding from the pre-gathered halo rows; W padding via replicate concat.
    h = jnp.concatenate([h_halo[:, 0:1], h_core, h_halo[:, 1:2]], axis=1)  # (NB,TH+2,W,E)
    hp = jnp.concatenate([h[:, :, :1], h, h[:, :, -1:]], axis=2)           # (NB,TH+2,W+2,E)

    taps = [hp[:, dy:dy + th, dx:dx + W, :] for dy in range(3) for dx in range(3)]
    if im2col:
        patches = jnp.concatenate(taps, axis=-1).reshape(m, 9 * e_pad)
        acc = jnp.dot(patches, w2_ref[...], preferred_element_type=jnp.float32)
    else:
        acc = jnp.dot(taps[0].reshape(m, e_pad), w2_ref[0],
                      preferred_element_type=jnp.float32)
        for t in range(1, 9):
            acc = acc + jnp.dot(taps[t].reshape(m, e_pad), w2_ref[t],
                                preferred_element_type=jnp.float32)
    acc = acc + b2_ref[...]
    o_ref[...] = acc.reshape(nb, th, W, cout_pad).astype(o_ref.dtype)


def fuse_params(params):
    """Pack per-head (w1, b1, w2, b2) into fused, lane-padded operands.

    per head: w1 (Cin, E), b1 (1, E), w2 (3, 3, E, Cout), b2 (1, Cout)
    fused   : w1 (Cin, E_pad) bf16, b1 (1, E_pad) f32,
              w2 (9, E_pad, Cout_pad) bf16 (block-diagonal, tap-major),
              b2 (1, Cout_pad) f32, plus per-head (offset, Cout) split info.
    """
    n_heads = len(params)
    cin, e = params[0][0].shape
    e_total = n_heads * e
    e_pad = _round_up(e_total, 128)
    couts = [p[2].shape[3] for p in params]
    cout_total = sum(couts)
    cout_pad = _round_up(cout_total, 128)

    w1f = jnp.zeros((cin, e_pad), jnp.float32)
    b1f = jnp.zeros((1, e_pad), jnp.float32)
    w2f = jnp.zeros((3, 3, e_pad, cout_pad), jnp.float32)
    b2f = jnp.zeros((1, cout_pad), jnp.float32)
    splits, off = [], 0
    for i, (w1, b1, w2, b2) in enumerate(params):
        cout = w2.shape[3]
        w1f = w1f.at[:, i * e:(i + 1) * e].set(w1)
        b1f = b1f.at[:, i * e:(i + 1) * e].set(b1)
        w2f = w2f.at[:, :, i * e:(i + 1) * e, off:off + cout].set(w2)
        b2f = b2f.at[:, off:off + cout].set(b2)
        splits.append((off, cout))
        off += cout
    w2f = w2f.reshape(9, e_pad, cout_pad)     # (dy,dx)-major taps; matches kernel tap order
    return dict(w1=w1f.astype(jnp.bfloat16), b1=b1f.astype(jnp.float32),
                w2=w2f.astype(jnp.bfloat16), b2=b2f.astype(jnp.float32),
                splits=tuple(splits), cout_total=cout_total)


def patch_to_condition_nhwc(x_nhwc, fused, *, im2col=None):
    """Fused forward on NHWC input (bf16 preferred).  Returns (N, H, W, Cout_pad) bf16."""
    x = x_nhwc.astype(jnp.bfloat16)
    n, h, w, cin = x.shape
    w1f, b1f, w2f_taps, b2f = fused["w1"], fused["b1"], fused["w2"], fused["b2"]
    e_pad = w1f.shape[1]
    cout_pad = b2f.shape[1]

    flavor = _tpu_flavor()
    if im2col is None:
        im2col = flavor != "v5e"            # v5e: 9-dot tap accumulate, no patch matrix
    mxu_rows = 128 if flavor == "v5e" else 256
    num_cores = 2 if flavor == "v7x" else 1
    vmem_limit = _vmem_limit_bytes()
    budget = vmem_limit // 2

    bpp = _bytes_per_pixel(cin, e_pad, cout_pad, im2col)
    nb, th = _choose_tiles(n, h, w, bpp, mxu_rows=mxu_rows,
                           num_cores=num_cores, budget=budget)
    n_ht = h // th

    # Per-H-tile halo rows (replicate at the image borders) gathered once, cheaply.
    halo_idx = []
    for j in range(n_ht):
        halo_idx += [max(j * th - 1, 0), min((j + 1) * th, h - 1)]
    halo = x[:, jnp.array(halo_idx, jnp.int32)]        # (N, 2*n_ht, W, Cin) bf16

    w2f = w2f_taps.reshape(9 * e_pad, cout_pad) if im2col else w2f_taps
    kern = functools.partial(_fused_heads_kernel, im2col=im2col)

    # TODO(synk): also tile W (with a column halo) if single-row working sets ever
    # exceed the VMEM budget at extreme widths.
    y = pl.pallas_call(
        kern,
        out_shape=jax.ShapeDtypeStruct((n, h, w, cout_pad), jnp.bfloat16),
        grid_spec=pltpu.PrefetchScalarGridSpec(
            num_scalar_prefetch=0,
            grid=(n // nb, n_ht),
            in_specs=[
                pl.BlockSpec((nb, th, w, cin), lambda i, j: (i, j, 0, 0)),
                pl.BlockSpec((nb, 2, w, cin), lambda i, j: (i, j, 0, 0)),
                pl.BlockSpec((cin, e_pad), lambda i, j: (0, 0)),
                pl.BlockSpec((1, e_pad), lambda i, j: (0, 0)),
                (pl.BlockSpec((9 * e_pad, cout_pad), lambda i, j: (0, 0)) if im2col
                 else pl.BlockSpec((9, e_pad, cout_pad), lambda i, j: (0, 0, 0))),
                pl.BlockSpec((1, cout_pad), lambda i, j: (0, 0)),
            ],
            out_specs=pl.BlockSpec((nb, th, w, cout_pad), lambda i, j: (i, j, 0, 0)),
        ),
        compiler_params=pltpu.CompilerParams(
            dimension_semantics=("parallel", "parallel"),
            vmem_limit_bytes=vmem_limit),
    )(x, halo, w1f, b1f, w2f, b2f)
    return y


def patch_to_condition(x_nchw, fused, *, im2col=None):
    """PyTorch-like entry point: NCHW f32 in, list of per-head NCHW f32 out.

    TODO(synk): if the producer can emit NHWC bf16 directly, call
    patch_to_condition_nhwc and skip this transpose's extra HBM round trip.
    """
    x_nhwc = jnp.transpose(x_nchw, (0, 2, 3, 1))
    y = patch_to_condition_nhwc(x_nhwc, fused, im2col=im2col)
    y = y[..., :fused["cout_total"]].astype(jnp.float32)   # one slice of the padded lanes
    outs = []
    for off, cout in fused["splits"]:
        outs.append(jnp.transpose(y[..., off:off + cout], (0, 3, 1, 2)))
    return outs


def init_patch_to_condition(key, embed_dim, outputs, cin=384):
    """Deterministic synthetic parameters matching the PyTorch module shapes.

    PyTorch:  conv1.weight (E, 384, 1, 1)  -> here w1 (384, E)
              conv2.weight (Cout, E, 3, 3) -> here w2 (3, 3, E, Cout)
    """
    params = []
    for cout in outputs:
        key, k1, k2, k3, k4 = jax.random.split(key, 5)
        w1 = jax.random.normal(k1, (cin, embed_dim), jnp.float32) * (1.0 / cin) ** 0.5
        b1 = jax.random.normal(k2, (1, embed_dim), jnp.float32) * 0.01
        w2 = jax.random.normal(k3, (3, 3, embed_dim, cout), jnp.float32) \
            * (1.0 / (9 * embed_dim)) ** 0.5
        b2 = jax.random.normal(k4, (1, cout), jnp.float32) * 0.01
        params.append((w1, b1, w2, b2))
    return params


def _ref_head(x_nhwc_bf16, w1, b1, w2, b2):
    """Pure-JAX reference with the same bf16-matmul / f32-accumulate precision."""
    n, hgt, wid, _ = x_nhwc_bf16.shape
    h = jnp.einsum('nhwc,ce->nhwe', x_nhwc_bf16, w1.astype(jnp.bfloat16),
                   preferred_element_type=jnp.float32) + b1[0]
    h = jnp.maximum(h, 0.2 * h)
    hp = jnp.pad(h, ((0, 0), (1, 1), (1, 1), (0, 0)), mode='edge')
    out = jnp.zeros((n, hgt, wid, w2.shape[-1]), jnp.float32)
    for dy in range(3):
        for dx in range(3):
            out = out + jnp.einsum(
                'nhwe,eo->nhwo',
                hp[:, dy:dy + hgt, dx:dx + wid, :].astype(jnp.bfloat16),
                w2[dy, dx].astype(jnp.bfloat16),
                preferred_element_type=jnp.float32)
    return out + b2[0]


if __name__ == "__main__":
    key = jax.random.PRNGKey(0)
    key, kx = jax.random.split(key)

    N, CIN, H, W = 2, 384, 8, 8          # Conv2d in_channels=384 is fixed by the module
    EMBED_DIM = 32
    OUTPUTS = (8, 16)

    x_nchw = jax.random.normal(kx, (N, CIN, H, W), jnp.float32)
    params = init_patch_to_condition(key, EMBED_DIM, OUTPUTS, cin=CIN)
    fused = fuse_params(params)

    # pure-JAX reference (same bf16 operand precision; round to bf16 like the kernel output)
    x_nhwc_bf16 = jnp.transpose(x_nchw, (0, 2, 3, 1)).astype(jnp.bfloat16)
    refs = []
    for (w1, b1, w2, b2) in params:
        r = _ref_head(x_nhwc_bf16, w1, b1, w2, b2)
        refs.append(jnp.transpose(r.astype(jnp.bfloat16).astype(jnp.float32), (0, 3, 1, 2)))

    # exercise both MXU variants (im2col dot and 9-tap accumulate)
    for im2col in (True, False):
        outs = patch_to_condition(x_nchw, fused, im2col=im2col)
        outs = [jax.block_until_ready(o) for o in outs]
        for o, r, cout in zip(outs, refs, OUTPUTS):
            assert o.shape == (N, cout, H, W), (o.shape, im2col)
            assert jnp.allclose(o, r, rtol=2e-2, atol=2e-2), \
                (im2col, float(jnp.max(jnp.abs(o - r))))

    print("KERNEL_OK")
</pallas_src>

<mosaic_0001>
module attributes {stable_mosaic.version = 11 : i64} {
  func.func @_fused_heads_kernel(%arg0: i32, %arg1: i32, %arg2: memref<2x8x8x384xbf16, #tpu.memory_space<vmem>>, %arg3: memref<2x2x8x384xbf16, #tpu.memory_space<vmem>>, %arg4: memref<384x128xbf16, #tpu.memory_space<vmem>>, %arg5: memref<1x128xf32, #tpu.memory_space<vmem>>, %arg6: memref<1152x128xbf16, #tpu.memory_space<vmem>>, %arg7: memref<1x128xf32, #tpu.memory_space<vmem>>, %arg8: memref<2x8x8x128xbf16, #tpu.memory_space<vmem>>) attributes {dimension_semantics = [#tpu.dimension_semantics<parallel>, #tpu.dimension_semantics<parallel>], iteration_bounds = array<i64: 1, 1>, scalar_prefetch = 0 : i64, scratch_operands = 0 : i64, tpu.core_type = #tpu.core_type<tc>, window_params = [{transform_indices = @transform_0, window_bounds = array<i64: 2, 8, 8, 384>}, {transform_indices = @transform_1, window_bounds = array<i64: 2, 2, 8, 384>}, {pipeline_mode = #tpu.pipeline_mode<synchronous>, transform_indices = @transform_2, window_bounds = array<i64: 384, 128>}, {pipeline_mode = #tpu.pipeline_mode<synchronous>, transform_indices = @transform_3, window_bounds = array<i64: 1, 128>}, {pipeline_mode = #tpu.pipeline_mode<synchronous>, transform_indices = @transform_4, window_bounds = array<i64: 1152, 128>}, {pipeline_mode = #tpu.pipeline_mode<synchronous>, transform_indices = @transform_5, window_bounds = array<i64: 1, 128>}, {transform_indices = @transform_6, window_bounds = array<i64: 2, 8, 8, 128>}]} {
    %c0 = arith.constant 0 : index
    %c0_0 = arith.constant 0 : index
    %c0_1 = arith.constant 0 : index
    %c0_2 = arith.constant 0 : index
    %0 = vector.load %arg2[%c0, %c0_0, %c0_1, %c0_2] : memref<2x8x8x384xbf16, #tpu.memory_space<vmem>>, vector<2x8x8x384xbf16>
    %1 = vector.shape_cast %0 : vector<2x8x8x384xbf16> to vector<128x384xbf16>
    %c0_3 = arith.constant 0 : index
    %c0_4 = arith.constant 0 : index
    %2 = vector.load %arg4[%c0_3, %c0_4] : memref<384x128xbf16, #tpu.memory_space<vmem>>, vector<384x128xbf16>
    %cst = arith.constant dense<0.000000e+00> : vector<128x128xf32>
    %3 = tpu.matmul %1, %2, %cst {dimension_numbers = #tpu.dot_dimension_numbers<[1], [0], [0], [1], [0, 0, 1, 1], [], []>} : vector<128x384xbf16>, vector<384x128xbf16>, vector<128x128xf32> -> vector<128x128xf32>
    %c0_5 = arith.constant 0 : index
    %c0_6 = arith.constant 0 : index
    %4 = vector.load %arg5[%c0_5, %c0_6] : memref<1x128xf32, #tpu.memory_space<vmem>>, vector<1x128xf32>
    %5 = vector.broadcast %4 : vector<1x128xf32> to vector<128x128xf32>
    %6 = arith.addf %3, %5 : vector<128x128xf32>
    %cst_7 = arith.constant 2.000000e-01 : f32
    %7 = vector.broadcast %cst_7 : f32 to vector<128x128xf32>
    %8 = arith.mulf %7, %6 : vector<128x128xf32>
    %9 = arith.maximumf %6, %8 : vector<128x128xf32>
    %10 = arith.truncf %9 : vector<128x128xf32> to vector<128x128xbf16>
    %11 = vector.shape_cast %10 : vector<128x128xbf16> to vector<2x8x8x128xbf16>
    %c0_8 = arith.constant 0 : index
    %c0_9 = arith.constant 0 : index
    %c0_10 = arith.constant 0 : index
    %c0_11 = arith.constant 0 : index
    %12 = vector.load %arg3[%c0_8, %c0_9, %c0_10, %c0_11] : memref<2x2x8x384xbf16, #tpu.memory_space<vmem>>, vector<2x2x8x384xbf16>
    %13 = vector.shape_cast %12 : vector<2x2x8x384xbf16> to vector<32x384xbf16>
    %c0_12 = arith.constant 0 : index
    %c0_13 = arith.constant 0 : index
    %14 = vector.load %arg4[%c0_12, %c0_13] : memref<384x128xbf16, #tpu.memory_space<vmem>>, vector<384x128xbf16>
    %cst_14 = arith.constant dense<0.000000e+00> : vector<32x128xf32>
    %15 = tpu.matmul %13, %14, %cst_14 {dimension_numbers = #tpu.dot_dimension_numbers<[1], [0], [0], [1], [0, 0, 1, 1], [], []>} : vector<32x384xbf16>, vector<384x128xbf16>, vector<32x128xf32> -> vector<32x128xf32>
    %c0_15 = arith.constant 0 : index
    %c0_16 = arith.constant 0 : index
    %16 = vector.load %arg5[%c0_15, %c0_16] : memref<1x128xf32, #tpu.memory_space<vmem>>, vector<1x128xf32>
    %17 = vector.broadcast %16 : vector<1x128xf32> to vector<32x128xf32>
    %18 = arith.addf %15, %17 : vector<32x128xf32>
    %cst_17 = arith.constant 2.000000e-01 : f32
    %19 = vector.broadcast %cst_17 : f32 to vector<32x128xf32>
    %20 = arith.mulf %19, %18 : vector<32x128xf32>
    %21 = arith.maximumf %18, %20 : vector<32x128xf32>
    %22 = arith.truncf %21 : vector<32x128xf32> to vector<32x128xbf16>
    %23 = vector.shape_cast %22 : vector<32x128xbf16> to vector<2x2x8x128xbf16>
    %24 = vector.extract_strided_slice %23 {offsets = [0, 0, 0, 0], sizes = [2, 1, 8, 128], strides = [1, 1, 1, 1]} : vector<2x2x8x128xbf16> to vector<2x1x8x128xbf16>
    %25 = vector.extract_strided_slice %23 {offsets = [0, 1, 0, 0], sizes = [2, 1, 8, 128], strides = [1, 1, 1, 1]} : vector<2x2x8x128xbf16> to vector<2x1x8x128xbf16>
    %26 = tpu.concatenate %24, %11, %25 in 1 : vector<2x1x8x128xbf16>, vector<2x8x8x128xbf16>, vector<2x1x8x128xbf16> -> vector<2x10x8x128xbf16>
    %27 = vector.extract_strided_slice %26 {offsets = [0, 0, 0, 0], sizes = [2, 10, 1, 128], strides = [1, 1, 1, 1]} : vector<2x10x8x128xbf16> to vector<2x10x1x128xbf16>
    %28 = vector.extract_strided_slice %26 {offsets = [0, 0, 7, 0], sizes = [2, 10, 1, 128], strides = [1, 1, 1, 1]} : vector<2x10x8x128xbf16> to vector<2x10x1x128xbf16>
    %29 = tpu.concatenate %27, %26, %28 in 2 : vector<2x10x1x128xbf16>, vector<2x10x8x128xbf16>, vector<2x10x1x128xbf16> -> vector<2x10x10x128xbf16>
    %30 = vector.extract_strided_slice %29 {offsets = [0, 0, 0, 0], sizes = [2, 8, 8, 128], strides = [1, 1, 1, 1]} : vector<2x10x10x128xbf16> to vector<2x8x8x128xbf16>
    %31 = vector.extract_strided_slice %29 {offsets = [0, 0, 1, 0], sizes = [2, 8, 8, 128], strides = [1, 1, 1, 1]} : vector<2x10x10x128xbf16> to vector<2x8x8x128xbf16>
    %32 = vector.extract_strided_slice %29 {offsets = [0, 0, 2, 0], sizes = [2, 8, 8, 128], strides = [1, 1, 1, 1]} : vector<2x10x10x128xbf16> to vector<2x8x8x128xbf16>
    %33 = vector.extract_strided_slice %29 {offsets = [0, 1, 0, 0], sizes = [2, 8, 8, 128], strides = [1, 1, 1, 1]} : vector<2x10x10x128xbf16> to vector<2x8x8x128xbf16>
    %34 = vector.extract_strided_slice %29 {offsets = [0, 1, 1, 0], sizes = [2, 8, 8, 128], strides = [1, 1, 1, 1]} : vector<2x10x10x128xbf16> to vector<2x8x8x128xbf16>
    %35 = vector.extract_strided_slice %29 {offsets = [0, 1, 2, 0], sizes = [2, 8, 8, 128], strides = [1, 1, 1, 1]} : vector<2x10x10x128xbf16> to vector<2x8x8x128xbf16>
    %36 = vector.extract_strided_slice %29 {offsets = [0, 2, 0, 0], sizes = [2, 8, 8, 128], strides = [1, 1, 1, 1]} : vector<2x10x10x128xbf16> to vector<2x8x8x128xbf16>
    %37 = vector.extract_strided_slice %29 {offsets = [0, 2, 1, 0], sizes = [2, 8, 8, 128], strides = [1, 1, 1, 1]} : vector<2x10x10x128xbf16> to vector<2x8x8x128xbf16>
    %38 = vector.extract_strided_slice %29 {offsets = [0, 2, 2, 0], sizes = [2, 8, 8, 128], strides = [1, 1, 1, 1]} : vector<2x10x10x128xbf16> to vector<2x8x8x128xbf16>
    %39 = tpu.concatenate %30, %31, %32, %33, %34, %35, %36, %37, %38 in 3 : vector<2x8x8x128xbf16>, vector<2x8x8x128xbf16>, vector<2x8x8x128xbf16>, vector<2x8x8x128xbf16>, vector<2x8x8x128xbf16>, vector<2x8x8x128xbf16>, vector<2x8x8x128xbf16>, vector<2x8x8x128xbf16>, vector<2x8x8x128xbf16> -> vector<2x8x8x1152xbf16>
    %40 = vector.shape_cast %39 : vector<2x8x8x1152xbf16> to vector<128x1152xbf16>
    %c0_18 = arith.constant 0 : index
    %c0_19 = arith.constant 0 : index
    %41 = vector.load %arg6[%c0_18, %c0_19] : memref<1152x128xbf16, #tpu.memory_space<vmem>>, vector<1152x128xbf16>
    %cst_20 = arith.constant dense<0.000000e+00> : vector<128x128xf32>
    %42 = tpu.matmul %40, %41, %cst_20 {dimension_numbers = #tpu.dot_dimension_numbers<[1], [0], [0], [1], [0, 0, 1, 1], [], []>} : vector<128x1152xbf16>, vector<1152x128xbf16>, vector<128x128xf32> -> vector<128x128xf32>
    %c0_21 = arith.constant 0 : index
    %c0_22 = arith.constant 0 : index
    %43 = vector.load %arg7[%c0_21, %c0_22] : memref<1x128xf32, #tpu.memory_space<vmem>>, vector<1x128xf32>
    %44 = vector.broadcast %43 : vector<1x128xf32> to vector<128x128xf32>
    %45 = arith.addf %42, %44 : vector<128x128xf32>
    %46 = vector.shape_cast %45 : vector<128x128xf32> to vector<2x8x8x128xf32>
    %47 = arith.truncf %46 : vector<2x8x8x128xf32> to vector<2x8x8x128xbf16>
    %c0_23 = arith.constant 0 : index
    %c0_24 = arith.constant 0 : index
    %c0_25 = arith.constant 0 : index
    %c0_26 = arith.constant 0 : index
    %48 = vector.load %arg8[%c0_23, %c0_24, %c0_25, %c0_26] : memref<2x8x8x128xbf16, #tpu.memory_space<vmem>>, vector<2x8x8x128xbf16>
    tpu.vector_store %arg8[%c0_23, %c0_24, %c0_25, %c0_26], %47 {strides = array<i32>} : memref<2x8x8x128xbf16, #tpu.memory_space<vmem>>, vector<2x8x8x128xbf16>,
    return
  }
  func.func @transform_0(%arg0: i32, %arg1: i32) -> (i32, i32, i32, i32) {
    %c0_i32 = arith.constant 0 : i32
    %c0_i32_0 = arith.constant 0 : i32
    %c0_i32_1 = arith.constant 0 : i32
    return %arg0, %arg1, %c0_i32, %c0_i32_0 : i32, i32, i32, i32
  }
  func.func @transform_1(%arg0: i32, %arg1: i32) -> (i32, i32, i32, i32) {
    %c0_i32 = arith.constant 0 : i32
    %c0_i32_0 = arith.constant 0 : i32
    %c0_i32_1 = arith.constant 0 : i32
    return %arg0, %arg1, %c0_i32, %c0_i32_0 : i32, i32, i32, i32
  }
  func.func @transform_2(%arg0: i32, %arg1: i32) -> (i32, i32) {
    %c0_i32 = arith.constant 0 : i32
    %c0_i32_0 = arith.constant 0 : i32
    %c0_i32_1 = arith.constant 0 : i32
    return %c0_i32, %c0_i32_0 : i32, i32
  }
  func.func @transform_3(%arg0: i32, %arg1: i32) -> (i32, i32) {
    %c0_i32 = arith.constant 0 : i32
    %c0_i32_0 = arith.constant 0 : i32
    %c0_i32_1 = arith.constant 0 : i32
    return %c0_i32, %c0_i32_0 : i32, i32
  }
  func.func @transform_4(%arg0: i32, %arg1: i32) -> (i32, i32) {
    %c0_i32 = arith.constant 0 : i32
    %c0_i32_0 = arith.constant 0 : i32
    %c0_i32_1 = arith.constant 0 : i32
    return %c0_i32, %c0_i32_0 : i32, i32
  }
  func.func @transform_5(%arg0: i32, %arg1: i32) -> (i32, i32) {
    %c0_i32 = arith.constant 0 : i32
    %c0_i32_0 = arith.constant 0 : i32
    %c0_i32_1 = arith.constant 0 : i32
    return %c0_i32, %c0_i32_0 : i32, i32
  }
  func.func @transform_6(%arg0: i32, %arg1: i32) -> (i32, i32, i32, i32) {
    %c0_i32 = arith.constant 0 : i32
    %c0_i32_0 = arith.constant 0 : i32
    %c0_i32_1 = arith.constant 0 : i32
    return %arg0, %arg1, %c0_i32, %c0_i32_0 : i32, i32, i32, i32
  }
}

</mosaic_0001>

<llo_original>
// kernel: tpu_custom_call.1
$region0: #{tpu_custom_call.1}
  #allocation0 [shape = 'u32[]', space=smem, size = 0x4, offset = 0x4, fixed_abs, tag = 'smem constant byte address 0x4 - core index']
  #allocation1 [shape = 'u32[144,128]{1,0:T(1,128)}', space=vmem, size = 0x12000, scoped, tag = 'internal scratch']
  %s0 = inlined_call_operand.hbm [shape: bf16[2,8,8,384], index: 0, kind: input, shape index: {}]
  %s1 = inlined_call_operand.hbm [shape: bf16[2,2,8,384], index: 1, kind: input, shape index: {}]
  %s2 = inlined_call_operand.hbm [shape: bf16[384,128], index: 2, kind: input, shape index: {}]
  %s3 = inlined_call_operand.hbm [shape: f32[1,128], index: 3, kind: input, shape index: {}]
  %s4 = inlined_call_operand.hbm [shape: bf16[1152,128], index: 4, kind: input, shape index: {}]
  %s5 = inlined_call_operand.hbm [shape: f32[1,128], index: 5, kind: input, shape index: {}]
  %s6 = inlined_call_operand.hbm [shape: bf16[2,8,8,128], index: 6, kind: output, shape index: {}]
  %s7 = sld [smem:[#allocation0]]
  $region58: #{tpu_custom_call.1} parent=0
    _
  %s9 = ssub.s32 1, %s7
  %s10 = scalar_select 0, %s9, %s7
  $region1: #{tpu_custom_call.1} parent=0
    #allocation2 [shape = 'u8[98304]{0}', space=vmem, size = 0x18000, scoped, tag = 'input window, operand 0, single buffered']
    #allocation3 [shape = 's32[1]{0}', space=sflag, size = 0x4, scoped, tag = 'scoped memory for tpu_custom_call.1']
    #allocation4 [shape = 's32[1]{0}', space=sflag, size = 0x4, scoped, tag = 'scoped memory for tpu_custom_call.1']
    #allocation5 [shape = 'u8[24576]{0}', space=vmem, size = 0x6000, scoped, tag = 'input window, operand 1, single buffered']
    #allocation6 [shape = 's32[1]{0}', space=sflag, size = 0x4, scoped, tag = 'scoped memory for tpu_custom_call.1']
    #allocation7 [shape = 'u8[98304]{0}', space=vmem, size = 0x18000, scoped, tag = 'input window, operand 2, single buffered']
    #allocation8 [shape = 'u8[512]{0}', space=vmem, size = 0x400, scoped, tag = 'input window, operand 3, single buffered']
    #allocation9 [shape = 's32[1]{0}', space=sflag, size = 0x4, scoped, tag = 'scoped memory for tpu_custom_call.1']
    #allocation10 [shape = 'u8[294912]{0}', space=vmem, size = 0x48000, scoped, tag = 'input window, operand 4, single buffered']
    #allocation11 [shape = 'u8[512]{0}', space=vmem, size = 0x400, scoped, tag = 'input window, operand 5, single buffered']
    #allocation12 [shape = 's32[1]{0}', space=sflag, size = 0x4, scoped, tag = 'scoped memory for tpu_custom_call.1']
    #allocation13 [shape = 'u8[32768]{0}', space=vmem, size = 0x8000, scoped, tag = 'output window, operand 0, single buffered']
    %11 = vsyncpa [#allocation3], 0
    %12 = vsyncpa [#allocation6], 0
    %13 = vsyncpa [#allocation9], 0
    %14 = vsyncpa [#allocation12], 0
    %15 = vsyncpa [#allocation4], 0
    // Predicated region
    $region2: #{tpu_custom_call.1} parent=1 // pred_check
      _
    $region3: #{tpu_custom_call.1} parent=1 // pred_check_branch
      %17 = sbr.rel (0) target = $region5
    $region4: #{tpu_custom_call.1} parent=1 // pred_region
      %s19 = ssub.s32 3072, 3072
      %20 = vsyncadd [#allocation3], %s19
      %s21 = sshll.u32 [#allocation2], 4
      %s22 = int_to_ptr.vmem [resolvable:$true] %s21
      %27 = dma.hbm_to_vmem [thread:$0]  %s0, 3072, %s22, [#allocation3], 192, 192, 12
    $region5: #{tpu_custom_call.1} parent=1 // pred_fallthru
      _
    // Predicated region
    $region6: #{tpu_custom_call.1} parent=1 // pred_check
      _
    $region7: #{tpu_custom_call.1} parent=1 // pred_check_branch
      %29 = sbr.rel (0) target = $region9
    $region8: #{tpu_custom_call.1} parent=1 // pred_region
      %s31 = ssub.s32 768, 768
      %32 = vsyncadd [#allocation6], %s31
      %s33 = sshll.u32 [#allocation5], 4
      %s34 = int_to_ptr.vmem [resolvable:$true] %s33
      %39 = dma.hbm_to_vmem [thread:$0]  %s1, 768, %s34, [#allocation6], 192, 192, 12
    $region9: #{tpu_custom_call.1} parent=1 // pred_fallthru
      _
    // Predicated region
    $region10: #{tpu_custom_call.1} parent=1 // pred_check
      _
    $region11: #{tpu_custom_call.1} parent=1 // pred_check_branch
      %41 = sbr.rel (0) target = $region13
    $region12: #{tpu_custom_call.1} parent=1 // pred_region
      %s43 = ssub.s32 3072, 3072
      %44 = vsyncadd [#allocation6], %s43
      %s45 = sshll.u32 [#allocation7], 4
      %s46 = int_to_ptr.vmem [resolvable:$true] %s45
      %51 = dma.hbm_to_vmem [thread:$0]  %s2, 3072, %s46, [#allocation6], 64, 64, 4
    $region13: #{tpu_custom_call.1} parent=1 // pred_fallthru
      _
    // Predicated region
    $region14: #{tpu_custom_call.1} parent=1 // pred_check
      _
    $region15: #{tpu_custom_call.1} parent=1 // pred_check_branch
      %53 = sbr.rel (0) target = $region17
    $region16: #{tpu_custom_call.1} parent=1 // pred_region
      %s55 = ssub.s32 16, 16
      %56 = vsyncadd [#allocation9], %s55
      %s58 = sshll.u32 [#allocation8], 4
      %s59 = int_to_ptr.vmem [resolvable:$true] %s58
      %61 = dma.hbm_to_vmem [thread:$0]  %s3, 16, %s59, [#allocation9]
    $region17: #{tpu_custom_call.1} parent=1 // pred_fallthru
      _
    // Predicated region
    $region18: #{tpu_custom_call.1} parent=1 // pred_check
      _
    $region19: #{tpu_custom_call.1} parent=1 // pred_check_branch
      %63 = sbr.rel (0) target = $region21
    $region20: #{tpu_custom_call.1} parent=1 // pred_region
      %s65 = ssub.s32 9216, 9216
      %66 = vsyncadd [#allocation9], %s65
      %s67 = sshll.u32 [#allocation10], 4
      %s68 = int_to_ptr.vmem [resolvable:$true] %s67
      %73 = dma.hbm_to_vmem [thread:$0]  %s4, 9216, %s68, [#allocation9], 64, 64, 4
    $region21: #{tpu_custom_call.1} parent=1 // pred_fallthru
      _
    // Predicated region
    $region22: #{tpu_custom_call.1} parent=1 // pred_check
      _
    $region23: #{tpu_custom_call.1} parent=1 // pred_check_branch
      %75 = sbr.rel (0) target = $region25
    $region24: #{tpu_custom_call.1} parent=1 // pred_region
      %s77 = ssub.s32 16, 16
      %78 = vsyncadd [#allocation12], %s77
      %s80 = sshll.u32 [#allocation11], 4
      %s81 = int_to_ptr.vmem [resolvable:$true] %s80
      %83 = dma.hbm_to_vmem [thread:$0]  %s5, 16, %s81, [#allocation12]
    $region25: #{tpu_custom_call.1} parent=1 // pred_fallthru
      _
    // Predicated region
    $region26: #{tpu_custom_call.1} parent=1 // pred_check
      _
    $region27: #{tpu_custom_call.1} parent=1 // pred_check_branch
      %85 = sbr.rel (0) target = $region29
    $region28: #{tpu_custom_call.1} parent=1 // pred_region
      %86 = dma.done [#allocation3], 3072
    $region29: #{tpu_custom_call.1} parent=1 // pred_fallthru
      _
    // Predicated region
    $region30: #{tpu_custom_call.1} parent=1 // pred_check
      _
    $region31: #{tpu_custom_call.1} parent=1 // pred_check_branch
      %88 = sbr.rel (0) target = $region33
    $region32: #{tpu_custom_call.1} parent=1 // pred_region
      %89 = dma.done [#allocation6], 768
    $region33: #{tpu_custom_call.1} parent=1 // pred_fallthru
      _
    // Predicated region
    $region34: #{tpu_custom_call.1} parent=1 // pred_check
      _
    $region35: #{tpu_custom_call.1} parent=1 // pred_check_branch
      %91 = sbr.rel (0) target = $region37
    $region36: #{tpu_custom_call.1} parent=1 // pred_region
      %92 = dma.done [#allocation6], 3072
    $region37: #{tpu_custom_call.1} parent=1 // pred_fallthru
      _
    // Predicated region
    $region38: #{tpu_custom_call.1} parent=1 // pred_check
      _
    $region39: #{tpu_custom_call.1} parent=1 // pred_check_branch
      %94 = sbr.rel (0) target = $region41
    $region40: #{tpu_custom_call.1} parent=1 // pred_region
      %95 = dma.done [#allocation9], 16
    $region41: #{tpu_custom_call.1} parent=1 // pred_fallthru
      _
    // Predicated region
    $region42: #{tpu_custom_call.1} parent=1 // pred_check
      _
    $region43: #{tpu_custom_call.1} parent=1 // pred_check_branch
      %97 = sbr.rel (0) target = $region45
    $region44: #{tpu_custom_call.1} parent=1 // pred_region
      %98 = dma.done [#allocation9], 9216
    $region45: #{tpu_custom_call.1} parent=1 // pred_fallthru
      _
    // Predicated region
    $region46: #{tpu_custom_call.1} parent=1 // pred_check
      _
    $region47: #{tpu_custom_call.1} parent=1 // pred_check_branch
      %100 = sbr.rel (0) target = $region49
    $region48: #{tpu_custom_call.1} parent=1 // pred_region
      %101 = dma.done [#allocation12], 16
    $region49: #{tpu_custom_call.1} parent=1 // pred_fallthru
      _
    %v103 = vld [vmem:[#allocation2] sm:$0xff]
    %v104 = vld [vmem:[#allocation2 + $0x8] sm:$0xf]
    %v105 = vld [vmem:[#allocation2 + $0xc] sm:$0xff]
    %v106 = vld [vmem:[#allocation2 + $0x14] sm:$0xf]
    %v107 = vld [vmem:[#allocation2 + $0x18] sm:$0xff]
    %v108 = vld [vmem:[#allocation2 + $0x20] sm:$0xf]
    %v109 = vld [vmem:[#allocation2 + $0x24] sm:$0xff]
    %v110 = vld [vmem:[#allocation2 + $0x2c] sm:$0xf]
    %v111 = vld [vmem:[#allocation2 + $0x30] sm:$0xff]
    %v112 = vld [vmem:[#allocation2 + $0x38] sm:$0xf]
    %v113 = vld [vmem:[#allocation2 + $0x3c] sm:$0xff]
    %v114 = vld [vmem:[#allocation2 + $0x44] sm:$0xf]
    %v115 = vld [vmem:[#allocation2 + $0x48] sm:$0xff]
    %v116 = vld [vmem:[#allocation2 + $0x50] sm:$0xf]
    %v117 = vld [vmem:[#allocation2 + $0x54] sm:$0xff]
    %v118 = vld [vmem:[#allocation2 + $0x5c] sm:$0xf]
    %v119 = vld [vmem:[#allocation2 + $0x60] sm:$0xff]
    %v120 = vld [vmem:[#allocation2 + $0x68] sm:$0xf]
    %v121 = vld [vmem:[#allocation2 + $0x6c] sm:$0xff]
    %v122 = vld [vmem:[#allocation2 + $0x74] sm:$0xf]
    %v123 = vld [vmem:[#allocation2 + $0x78] sm:$0xff]
    %v124 = vld [vmem:[#allocation2 + $0x80] sm:$0xf]
    %v125 = vld [vmem:[#allocation2 + $0x84] sm:$0xff]
    %v126 = vld [vmem:[#allocation2 + $0x8c] sm:$0xf]
    %v127 = vld [vmem:[#allocation2 + $0x90] sm:$0xff]
    %v128 = vld [vmem:[#allocation2 + $0x98] sm:$0xf]
    %v129 = vld [vmem:[#allocation2 + $0x9c] sm:$0xff]
    %v130 = vld [vmem:[#allocation2 + $0xa4] sm:$0xf]
    %v131 = vld [vmem:[#allocation2 + $0xa8] sm:$0xff]
    %v132 = vld [vmem:[#allocation2 + $0xb0] sm:$0xf]
    %v133 = vld [vmem:[#allocation2 + $0xb4] sm:$0xff]
    %v134 = vld [vmem:[#allocation2 + $0xbc] sm:$0xf]
    %v135 = vld [vmem:[#allocation7] sm:$0xf]
    %v136 = vld [vmem:[#allocation7 + $0x4] sm:$0xf]
    %v137 = vld [vmem:[#allocation7 + $0x8] sm:$0xf]
    %v138 = vld [vmem:[#allocation7 + $0xc] sm:$0xf]
    %v139 = vld [vmem:[#allocation7 + $0x10] sm:$0xf]
    %v140 = vld [vmem:[#allocation7 + $0x14] sm:$0xf]
    %v141 = vld [vmem:[#allocation7 + $0x18] sm:$0xf]
    %v142 = vld [vmem:[#allocation7 + $0x1c] sm:$0xf]
    %v143 = vld [vmem:[#allocation7 + $0x20] sm:$0xf]
    %v144 = vld [vmem:[#allocation7 + $0x24] sm:$0xf]
    %v145 = vld [vmem:[#allocation7 + $0x28] sm:$0xf]
    %v146 = vld [vmem:[#allocation7 + $0x2c] sm:$0xf]
    %v147 = vld [vmem:[#allocation7 + $0x30] sm:$0xf]
    %v148 = vld [vmem:[#allocation7 + $0x34] sm:$0xf]
    %v149 = vld [vmem:[#allocation7 + $0x38] sm:$0xf]
    %v150 = vld [vmem:[#allocation7 + $0x3c] sm:$0xf]
    %v151 = vld [vmem:[#allocation7 + $0x40] sm:$0xf]
    %v152 = vld [vmem:[#allocation7 + $0x44] sm:$0xf]
    %v153 = vld [vmem:[#allocation7 + $0x48] sm:$0xf]
    %v154 = vld [vmem:[#allocation7 + $0x4c] sm:$0xf]
    %v155 = vld [vmem:[#allocation7 + $0x50] sm:$0xf]
    %v156 = vld [vmem:[#allocation7 + $0x54] sm:$0xf]
    %v157 = vld [vmem:[#allocation7 + $0x58] sm:$0xf]
    %v158 = vld [vmem:[#allocation7 + $0x5c] sm:$0xf]
    %v159 = vld [vmem:[#allocation7 + $0x60] sm:$0xf]
    %v160 = vld [vmem:[#allocation7 + $0x64] sm:$0xf]
    %v161 = vld [vmem:[#allocation7 + $0x68] sm:$0xf]
    %v162 = vld [vmem:[#allocation7 + $0x6c] sm:$0xf]
    %v163 = vld [vmem:[#allocation7 + $0x70] sm:$0xf]
    %v164 = vld [vmem:[#allocation7 + $0x74] sm:$0xf]
    %v165 = vld [vmem:[#allocation7 + $0x78] sm:$0xf]
    %v166 = vld [vmem:[#allocation7 + $0x7c] sm:$0xf]
    %v167 = vld [vmem:[#allocation7 + $0x80] sm:$0xf]
    %v168 = vld [vmem:[#allocation7 + $0x84] sm:$0xf]
    %v169 = vld [vmem:[#allocation7 + $0x88] sm:$0xf]
    %v170 = vld [vmem:[#allocation7 + $0x8c] sm:$0xf]
    %v171 = vld [vmem:[#allocation7 + $0x90] sm:$0xf]
    %v172 = vld [vmem:[#allocation7 + $0x94] sm:$0xf]
    %v173 = vld [vmem:[#allocation7 + $0x98] sm:$0xf]
    %v174 = vld [vmem:[#allocation7 + $0x9c] sm:$0xf]
    %v175 = vld [vmem:[#allocation7 + $0xa0] sm:$0xf]
    %v176 = vld [vmem:[#allocation7 + $0xa4] sm:$0xf]
    %v177 = vld [vmem:[#allocation7 + $0xa8] sm:$0xf]
    %v178 = vld [vmem:[#allocation7 + $0xac] sm:$0xf]
    %v179 = vld [vmem:[#allocation7 + $0xb0] sm:$0xf]
    %v180 = vld [vmem:[#allocation7 + $0xb4] sm:$0xf]
    %v181 = vld [vmem:[#allocation7 + $0xb8] sm:$0xf]
    %v182 = vld [vmem:[#allocation7 + $0xbc] sm:$0xf]
    %v183 = vld [vmem:[#allocation8] sm:$0x1]
    %v185 = vlaneseq
    %v186 = vshrl.u32 %v185, 7
    %v187 = vsub.s32 0, %v186
    %v188 = vrot.slane %v183, %v187
    %v222 = vunpack.c.l.b16 %v103
    %v223 = vunpack.c.h.b16 %v103
    %v224 = vunpack.c.l.b16 %v104
    %v225 = vunpack.c.l.b16 %v105
    %v226 = vunpack.c.h.b16 %v105
    %v227 = vunpack.c.l.b16 %v106
    %v228 = vunpack.c.l.b16 %v107
    %v229 = vunpack.c.h.b16 %v107
    %v230 = vunpack.c.l.b16 %v108
    %v231 = vunpack.c.l.b16 %v109
    %v232 = vunpack.c.h.b16 %v109
    %v233 = vunpack.c.l.b16 %v110
    %v234 = vunpack.c.l.b16 %v111
    %v235 = vunpack.c.h.b16 %v111
    %v236 = vunpack.c.l.b16 %v112
    %v237 = vunpack.c.l.b16 %v113
    %v238 = vunpack.c.h.b16 %v113
    %v239 = vunpack.c.l.b16 %v114
    %v240 = vunpack.c.l.b16 %v115
    %v241 = vunpack.c.h.b16 %v115
    %v242 = vunpack.c.l.b16 %v116
    %v243 = vunpack.c.l.b16 %v117
    %v244 = vunpack.c.h.b16 %v117
    %v245 = vunpack.c.l.b16 %v118
    %v246 = vunpack.c.l.b16 %v119
    %v247 = vunpack.c.h.b16 %v119
    %v248 = vunpack.c.l.b16 %v120
    %v249 = vunpack.c.l.b16 %v121
    %v250 = vunpack.c.h.b16 %v121
    %v251 = vunpack.c.l.b16 %v122
    %v252 = vunpack.c.l.b16 %v123
    %v253 = vunpack.c.h.b16 %v123
    %v254 = vunpack.c.l.b16 %v124
    %v255 = vunpack.c.l.b16 %v125
    %v256 = vunpack.c.h.b16 %v125
    %v257 = vunpack.c.l.b16 %v126
    %v258 = vunpack.c.l.b16 %v127
    %v259 = vunpack.c.h.b16 %v127
    %v260 = vunpack.c.l.b16 %v128
    %v261 = vunpack.c.l.b16 %v129
    %v262 = vunpack.c.h.b16 %v129
    %v263 = vunpack.c.l.b16 %v130
    %v264 = vunpack.c.l.b16 %v131
    %v265 = vunpack.c.h.b16 %v131
    %v266 = vunpack.c.l.b16 %v132
    %v267 = vunpack.c.l.b16 %v133
    %v268 = vunpack.c.h.b16 %v133
    %v269 = vunpack.c.l.b16 %v134
    %v270 = vpack.c.b16 %v225, %v222
    %v271 = vpack.c.b16 %v226, %v223
    %v272 = vpack.c.b16 %v227, %v224
    %v273 = vpack.c.b16 %v231, %v228
    %v274 = vpack.c.b16 %v232, %v229
    %v275 = vpack.c.b16 %v233, %v230
    %v276 = vpack.c.b16 %v237, %v234
    %v277 = vpack.c.b16 %v238, %v235
    %v278 = vpack.c.b16 %v239, %v236
    %v279 = vpack.c.b16 %v243, %v240
    %v280 = vpack.c.b16 %v244, %v241
    %v281 = vpack.c.b16 %v245, %v242
    %v282 = vpack.c.b16 %v249, %v246
    %v283 = vpack.c.b16 %v250, %v247
    %v284 = vpack.c.b16 %v251, %v248
    %v285 = vpack.c.b16 %v255, %v252
    %v286 = vpack.c.b16 %v256, %v253
    %v287 = vpack.c.b16 %v257, %v254
    %v288 = vpack.c.b16 %v261, %v258
    %v289 = vpack.c.b16 %v262, %v259
    %v290 = vpack.c.b16 %v263, %v260
    %v291 = vpack.c.b16 %v267, %v264
    %v292 = vpack.c.b16 %v268, %v265
    %v293 = vpack.c.b16 %v269, %v266
    %v366 = vunpack.c.l.b16 %v135
    %v367 = vunpack.c.l.b16 %v136
    %v368 = vunpack.c.l.b16 %v137
    %v369 = vunpack.c.l.b16 %v138
    %v370 = vunpack.c.l.b16 %v139
    %v371 = vunpack.c.l.b16 %v140
    %v372 = vunpack.c.l.b16 %v141
    %v373 = vunpack.c.l.b16 %v142
    %v374 = vunpack.c.l.b16 %v143
    %v375 = vunpack.c.l.b16 %v144
    %v376 = vunpack.c.l.b16 %v145
    %v377 = vunpack.c.l.b16 %v146
    %v378 = vunpack.c.l.b16 %v147
    %v379 = vunpack.c.l.b16 %v148
    %v380 = vunpack.c.l.b16 %v149
    %v381 = vunpack.c.l.b16 %v150
    %v382 = vunpack.c.l.b16 %v151
    %v383 = vunpack.c.l.b16 %v152
    %v384 = vunpack.c.l.b16 %v153
    %v385 = vunpack.c.l.b16 %v154
    %v386 = vunpack.c.l.b16 %v155
    %v387 = vunpack.c.l.b16 %v156
    %v388 = vunpack.c.l.b16 %v157
    %v389 = vunpack.c.l.b16 %v158
    %v390 = vunpack.c.l.b16 %v159
    %v391 = vunpack.c.l.b16 %v160
    %v392 = vunpack.c.l.b16 %v161
    %v393 = vunpack.c.l.b16 %v162
    %v394 = vunpack.c.l.b16 %v163
    %v395 = vunpack.c.l.b16 %v164
    %v396 = vunpack.c.l.b16 %v165
    %v397 = vunpack.c.l.b16 %v166
    %v398 = vunpack.c.l.b16 %v167
    %v399 = vunpack.c.l.b16 %v168
    %v400 = vunpack.c.l.b16 %v169
    %v401 = vunpack.c.l.b16 %v170
    %v402 = vunpack.c.l.b16 %v171
    %v403 = vunpack.c.l.b16 %v172
    %v404 = vunpack.c.l.b16 %v173
    %v405 = vunpack.c.l.b16 %v174
    %v406 = vunpack.c.l.b16 %v175
    %v407 = vunpack.c.l.b16 %v176
    %v408 = vunpack.c.l.b16 %v177
    %v409 = vunpack.c.l.b16 %v178
    %v410 = vunpack.c.l.b16 %v179
    %v411 = vunpack.c.l.b16 %v180
    %v412 = vunpack.c.l.b16 %v181
    %v413 = vunpack.c.l.b16 %v182
    %v414 = vpack.c.b16 %v367, %v366
    %v415 = vpack.c.b16 %v369, %v368
    %v416 = vpack.c.b16 %v371, %v370
    %v417 = vpack.c.b16 %v373, %v372
    %v418 = vpack.c.b16 %v375, %v374
    %v419 = vpack.c.b16 %v377, %v376
    %v420 = vpack.c.b16 %v379, %v378
    %v421 = vpack.c.b16 %v381, %v380
    %v422 = vpack.c.b16 %v383, %v382
    %v423 = vpack.c.b16 %v385, %v384
    %v424 = vpack.c.b16 %v387, %v386
    %v425 = vpack.c.b16 %v389, %v388
    %v426 = vpack.c.b16 %v391, %v390
    %v427 = vpack.c.b16 %v393, %v392
    %v428 = vpack.c.b16 %v395, %v394
    %v429 = vpack.c.b16 %v397, %v396
    %v430 = vpack.c.b16 %v399, %v398
    %v431 = vpack.c.b16 %v401, %v400
    %v432 = vpack.c.b16 %v403, %v402
    %v433 = vpack.c.b16 %v405, %v404
    %v434 = vpack.c.b16 %v407, %v406
    %v435 = vpack.c.b16 %v409, %v408
    %v436 = vpack.c.b16 %v411, %v410
    %v437 = vpack.c.b16 %v413, %v412
    %462 = vmatprep.subr.bf16.mxu0 0
    %463 = vmatpush1.bf16.msra.mxu0 %v414
    %464 = vmatprep.subr.bf16.mxu0 0
    %465 = vmatpush1.bf16.msra.mxu0 %v415
    %466 = vmatprep.subr.bf16.mxu0 0
    %467 = vmatpush1.bf16.msra.mxu0 %v416
    %468 = vmatprep.subr.bf16.mxu0 0
    %469 = vmatpush1.bf16.msra.mxu0 %v417
    %470 = vmatprep.subr.bf16.mxu0 0
    %471 = vmatpush1.bf16.msra.mxu0 %v418
    %472 = vmatprep.subr.bf16.mxu0 0
    %473 = vmatpush1.bf16.msra.mxu0 %v419
    %474 = vmatprep.subr.bf16.mxu0 0
    %475 = vmatpush1.bf16.msra.mxu0 %v420
    %476 = vmatprep.subr.bf16.mxu0 0
    %477 = vmatpush1.bf16.msra.mxu0 %v421
    %478 = vmatprep.subr.bf16.mxu0 0
    %479 = vmatpush1.bf16.msra.mxu0 %v422
    %480 = vmatprep.subr.bf16.mxu0 0
    %481 = vmatpush1.bf16.msra.mxu0 %v423
    %482 = vmatprep.subr.bf16.mxu0 0
    %483 = vmatpush1.bf16.msra.mxu0 %v424
    %484 = vmatprep.subr.bf16.mxu0 0
    %485 = vmatpush1.bf16.msra.mxu0 %v425
    %486 = vmatprep.subr.bf16.mxu0 0
    %487 = vmatpush1.bf16.msra.mxu0 %v426
    %488 = vmatprep.subr.bf16.mxu0 0
    %489 = vmatpush1.bf16.msra.mxu0 %v427
    %490 = vmatprep.subr.bf16.mxu0 0
    %491 = vmatpush1.bf16.msra.mxu0 %v428
    %492 = vmatprep.subr.bf16.mxu0 0
    %493 = vmatpush1.bf16.msra.mxu0 %v429
    %494 = vmatprep.mubr.bf16.mxu0 %v271
    %495 = vmatmul.mubr.bf16.gmra.mrb[0].mxu0 %v270
    %v496 = vpop.f32.mrb[0].mxu0
    %v497 = vadd.f32 %v188, %v496
    %v498 = vpop.f32.mrb[0].mxu0
    %v499 = vpop.f32.mrb[0].mxu0
    %v500 = vadd.f32 %v188, %v499
    %v501 = vpop.f32.mrb[0].mxu0
    %502 = vmatprep.mubr.bf16.mxu0 %v274
    %503 = vmatmul.mubr.bf16.gmra.mrb[0].mxu0 %v273
    %v504 = vpop.f32.mrb[0].mxu0
    %v505 = vadd.f32 %v188, %v504
    %v506 = vpop.f32.mrb[0].mxu0
    %v507 = vpop.f32.mrb[0].mxu0
    %v508 = vadd.f32 %v188, %v507
    %v509 = vpop.f32.mrb[0].mxu0
    %510 = vmatprep.mubr.bf16.mxu0 %v277
    %511 = vmatmul.mubr.bf16.gmra.mrb[0].mxu0 %v276
    %v512 = vpop.f32.mrb[0].mxu0
    %v513 = vadd.f32 %v188, %v512
    %v514 = vpop.f32.mrb[0].mxu0
    %v515 = vpop.f32.mrb[0].mxu0
    %v516 = vadd.f32 %v188, %v515
    %v517 = vpop.f32.mrb[0].mxu0
    %518 = vmatprep.mubr.bf16.mxu0 %v280
    %519 = vmatmul.mubr.bf16.gmra.mrb[0].mxu0 %v279
    %v520 = vpop.f32.mrb[0].mxu0
    %v521 = vadd.f32 %v188, %v520
    %v522 = vpop.f32.mrb[0].mxu0
    %v523 = vpop.f32.mrb[0].mxu0
    %v524 = vadd.f32 %v188, %v523
    %v525 = vpop.f32.mrb[0].mxu0
    %526 = vmatprep.mubr.bf16.mxu0 %v283
    %527 = vmatmul.mubr.bf16.gmra.mrb[0].mxu0 %v282
    %v528 = vpop.f32.mrb[0].mxu0
    %v529 = vadd.f32 %v188, %v528
    %v530 = vpop.f32.mrb[0].mxu0
    %v531 = vpop.f32.mrb[0].mxu0
    %v532 = vadd.f32 %v188, %v531
    %v533 = vpop.f32.mrb[0].mxu0
    %534 = vmatprep.mubr.bf16.mxu0 %v286
    %535 = vmatmul.mubr.bf16.gmra.mrb[0].mxu0 %v285
    %v536 = vpop.f32.mrb[0].mxu0
    %v537 = vadd.f32 %v188, %v536
    %v538 = vpop.f32.mrb[0].mxu0
    %v539 = vpop.f32.mrb[0].mxu0
    %v540 = vadd.f32 %v188, %v539
    %v541 = vpop.f32.mrb[0].mxu0
    %542 = vmatprep.mubr.bf16.mxu0 %v289
    %543 = vmatmul.mubr.bf16.gmra.mrb[0].mxu0 %v288
    %v544 = vpop.f32.mrb[0].mxu0
    %v545 = vadd.f32 %v188, %v544
    %v546 = vpop.f32.mrb[0].mxu0
    %v547 = vpop.f32.mrb[0].mxu0
    %v548 = vadd.f32 %v188, %v547
    %v549 = vpop.f32.mrb[0].mxu0
    %550 = vmatprep.mubr.bf16.mxu0 %v292
    %551 = vmatmul.mubr.bf16.gmra.mrb[0].mxu0 %v291
    %v552 = vpop.f32.mrb[0].mxu0
    %v553 = vadd.f32 %v188, %v552
    %v554 = vpop.f32.mrb[0].mxu0
    %v555 = vpop.f32.mrb[0].mxu0
    %v556 = vadd.f32 %v188, %v555
    %v557 = vpop.f32.mrb[0].mxu0
    %558 = vdwg.mxu0
    %559 = vmatprep.subr.bf16.mxu0 0
    %560 = vmatpush1.bf16.msra.mxu0 %v430
    %561 = vmatprep.subr.bf16.mxu0 0
    %562 = vmatpush1.bf16.msra.mxu0 %v431
    %563 = vmatprep.subr.bf16.mxu0 0
    %564 = vmatpush1.bf16.msra.mxu0 %v432
    %565 = vmatprep.subr.bf16.mxu0 0
    %566 = vmatpush1.bf16.msra.mxu0 %v433
    %567 = vmatprep.subr.bf16.mxu0 0
    %568 = vmatpush1.bf16.msra.mxu0 %v434
    %569 = vmatprep.subr.bf16.mxu0 0
    %570 = vmatpush1.bf16.msra.mxu0 %v435
    %571 = vmatprep.subr.bf16.mxu0 0
    %572 = vmatpush1.bf16.msra.mxu0 %v436
    %573 = vmatprep.subr.bf16.mxu0 0
    %574 = vmatpush1.bf16.msra.mxu0 %v437
    %575 = vmatprep.subr.bf16.mxu0 0
    %576 = vmatpush1.bf16.msra.mxu0 0
    %577 = vmatprep.subr.bf16.mxu0 0
    %578 = vmatpush1.bf16.msra.mxu0 0
    %579 = vmatprep.subr.bf16.mxu0 0
    %580 = vmatpush1.bf16.msra.mxu0 0
    %581 = vmatprep.subr.bf16.mxu0 0
    %582 = vmatpush1.bf16.msra.mxu0 0
    %583 = vmatprep.subr.bf16.mxu0 0
    %584 = vmatpush1.bf16.msra.mxu0 0
    %585 = vmatprep.subr.bf16.mxu0 0
    %586 = vmatpush1.bf16.msra.mxu0 0
    %587 = vmatprep.subr.bf16.mxu0 0
    %588 = vmatpush1.bf16.msra.mxu0 0
    %589 = vmatprep.subr.bf16.mxu0 0
    %590 = vmatpush1.bf16.msra.mxu0 0
    %591 = vmatprep.mubr.bf16.mxu0 0
    %592 = vmatmul.mubr.bf16.gmra.mrb[0].mxu0 %v272
    %v593 = vpop.f32.mrb[0].mxu0
    %v594 = vadd.f32 %v497, %v593
    %v595 = vpop.f32.mrb[0].mxu0
    %v596 = vpop.f32.mrb[0].mxu0
    %v597 = vadd.f32 %v500, %v596
    %v598 = vpop.f32.mrb[0].mxu0
    %599 = vmatprep.mubr.bf16.mxu0 0
    %600 = vmatmul.mubr.bf16.gmra.mrb[0].mxu0 %v275
    %v601 = vpop.f32.mrb[0].mxu0
    %v602 = vadd.f32 %v505, %v601
    %v603 = vpop.f32.mrb[0].mxu0
    %v604 = vpop.f32.mrb[0].mxu0
    %v605 = vadd.f32 %v508, %v604
    %v606 = vpop.f32.mrb[0].mxu0
    %607 = vmatprep.mubr.bf16.mxu0 0
    %608 = vmatmul.mubr.bf16.gmra.mrb[0].mxu0 %v278
    %v609 = vpop.f32.mrb[0].mxu0
    %v610 = vadd.f32 %v513, %v609
    %v611 = vpop.f32.mrb[0].mxu0
    %v612 = vpop.f32.mrb[0].mxu0
    %v613 = vadd.f32 %v516, %v612
    %v614 = vpop.f32.mrb[0].mxu0
    %615 = vmatprep.mubr.bf16.mxu0 0
    %616 = vmatmul.mubr.bf16.gmra.mrb[0].mxu0 %v281
    %v617 = vpop.f32.mrb[0].mxu0
    %v618 = vadd.f32 %v521, %v617
    %v619 = vpop.f32.mrb[0].mxu0
    %v620 = vpop.f32.mrb[0].mxu0
    %v621 = vadd.f32 %v524, %v620
    %v622 = vpop.f32.mrb[0].mxu0
    %623 = vmatprep.mubr.bf16.mxu0 0
    %624 = vmatmul.mubr.bf16.gmra.mrb[0].mxu0 %v284
    %v625 = vpop.f32.mrb[0].mxu0
    %v626 = vadd.f32 %v529, %v625
    %v627 = vpop.f32.mrb[0].mxu0
    %v628 = vpop.f32.mrb[0].mxu0
    %v629 = vadd.f32 %v532, %v628
    %v630 = vpop.f32.mrb[0].mxu0
    %631 = vmatprep.mubr.bf16.mxu0 0
    %632 = vmatmul.mubr.bf16.gmra.mrb[0].mxu0 %v287
    %v633 = vpop.f32.mrb[0].mxu0
    %v634 = vadd.f32 %v537, %v633
    %v635 = vpop.f32.mrb[0].mxu0
    %v636 = vpop.f32.mrb[0].mxu0
    %v637 = vadd.f32 %v540, %v636
    %v638 = vpop.f32.mrb[0].mxu0
    %639 = vmatprep.mubr.bf16.mxu0 0
    %640 = vmatmul.mubr.bf16.gmra.mrb[0].mxu0 %v290
    %v641 = vpop.f32.mrb[0].mxu0
    %v642 = vadd.f32 %v545, %v641
    %v643 = vpop.f32.mrb[0].mxu0
    %v644 = vpop.f32.mrb[0].mxu0
    %v645 = vadd.f32 %v548, %v644
    %v646 = vpop.f32.mrb[0].mxu0
    %647 = vmatprep.mubr.bf16.mxu0 0
    %648 = vmatmul.mubr.bf16.gmra.mrb[0].mxu0 %v293
    %v649 = vpop.f32.mrb[0].mxu0
    %v650 = vadd.f32 %v553, %v649
    %v651 = vpop.f32.mrb[0].mxu0
    %v652 = vpop.f32.mrb[0].mxu0
    %v653 = vadd.f32 %v556, %v652
    %v654 = vpop.f32.mrb[0].mxu0
    %655 = vdwg.mxu0
    %v656 = vmul.f32 %v594, 0.2
    %v657 = vmul.f32 %v597, 0.2
    %v658 = vmul.f32 %v602, 0.2
    %v659 = vmul.f32 %v605, 0.2
    %v660 = vmul.f32 %v610, 0.2
    %v661 = vmul.f32 %v613, 0.2
    %v662 = vmul.f32 %v618, 0.2
    %v663 = vmul.f32 %v621, 0.2
    %v664 = vmul.f32 %v626, 0.2
    %v665 = vmul.f32 %v629, 0.2
    %v666 = vmul.f32 %v634, 0.2
    %v667 = vmul.f32 %v637, 0.2
    %v668 = vmul.f32 %v642, 0.2
    %v669 = vmul.f32 %v645, 0.2
    %v670 = vmul.f32 %v650, 0.2
    %v671 = vmul.f32 %v653, 0.2
    %v672 = vmax.f32 %v594, %v656
    %v673 = vmax.f32 %v597, %v657
    %v674 = vmax.f32 %v602, %v658
    %v675 = vmax.f32 %v605, %v659
    %v676 = vmax.f32 %v610, %v660
    %v677 = vmax.f32 %v613, %v661
    %v678 = vmax.f32 %v618, %v662
    %v679 = vmax.f32 %v621, %v663
    %v680 = vmax.f32 %v626, %v664
    %v681 = vmax.f32 %v629, %v665
    %v682 = vmax.f32 %v634, %v666
    %v683 = vmax.f32 %v637, %v667
    %v684 = vmax.f32 %v642, %v668
    %v685 = vmax.f32 %v645, %v669
    %v686 = vmax.f32 %v650, %v670
    %v687 = vmax.f32 %v653, %v671
    %v688 = vpack.c.bf16 %v673, %v672
    %v689 = vpack.c.bf16 %v675, %v674
    %v690 = vpack.c.bf16 %v677, %v676
    %v691 = vpack.c.bf16 %v679, %v678
    %v692 = vpack.c.bf16 %v681, %v680
    %v693 = vpack.c.bf16 %v683, %v682
    %v694 = vpack.c.bf16 %v685, %v684
    %v695 = vpack.c.bf16 %v687, %v686
    %v704 = vunpack.c.l.b16 %v688
    %v705 = vunpack.c.h.b16 %v688
    %v706 = vunpack.c.l.b16 %v689
    %v707 = vunpack.c.h.b16 %v689
    %v708 = vunpack.c.l.b16 %v690
    %v709 = vunpack.c.h.b16 %v690
    %v710 = vunpack.c.l.b16 %v691
    %v711 = vunpack.c.h.b16 %v691
    %v712 = vunpack.c.l.b16 %v692
    %v713 = vunpack.c.h.b16 %v692
    %v714 = vunpack.c.l.b16 %v693
    %v715 = vunpack.c.h.b16 %v693
    %v716 = vunpack.c.l.b16 %v694
    %v717 = vunpack.c.h.b16 %v694
    %v718 = vunpack.c.l.b16 %v695
    %v719 = vunpack.c.h.b16 %v695
    %v720 = vpack.c.b16 %v704, %v704
    %v721 = vpack.c.b16 %v705, %v705
    %v722 = vpack.c.b16 %v706, %v706
    %v723 = vpack.c.b16 %v707, %v707
    %v724 = vpack.c.b16 %v708, %v708
    %v725 = vpack.c.b16 %v709, %v709
    %v726 = vpack.c.b16 %v710, %v710
    %v727 = vpack.c.b16 %v711, %v711
    %v728 = vpack.c.b16 %v712, %v712
    %v729 = vpack.c.b16 %v713, %v713
    %v730 = vpack.c.b16 %v714, %v714
    %v731 = vpack.c.b16 %v715, %v715
    %v732 = vpack.c.b16 %v716, %v716
    %v733 = vpack.c.b16 %v717, %v717
    %v734 = vpack.c.b16 %v718, %v718
    %v735 = vpack.c.b16 %v719, %v719
    %v752 = vld [vmem:[#allocation5] sm:$0xff]
    %v753 = vld [vmem:[#allocation5 + $0x8] sm:$0xf]
    %v754 = vld [vmem:[#allocation5 + $0xc] sm:$0xff]
    %v755 = vld [vmem:[#allocation5 + $0x14] sm:$0xf]
    %v756 = vld [vmem:[#allocation5 + $0x18] sm:$0xff]
    %v757 = vld [vmem:[#allocation5 + $0x20] sm:$0xf]
    %v758 = vld [vmem:[#allocation5 + $0x24] sm:$0xff]
    %v759 = vld [vmem:[#allocation5 + $0x2c] sm:$0xf]
    %v768 = vunpack.c.l.b16 %v752
    %v769 = vunpack.c.h.b16 %v752
    %v770 = vunpack.c.l.b16 %v753
    %v771 = vunpack.c.l.b16 %v754
    %v772 = vunpack.c.h.b16 %v754
    %v773 = vunpack.c.l.b16 %v755
    %v774 = vunpack.c.l.b16 %v756
    %v775 = vunpack.c.h.b16 %v756
    %v776 = vunpack.c.l.b16 %v757
    %v777 = vunpack.c.l.b16 %v758
    %v778 = vunpack.c.h.b16 %v758
    %v779 = vunpack.c.l.b16 %v759
    %v780 = vpack.c.b16 %v771, %v768
    %v781 = vpack.c.b16 %v772, %v769
    %v782 = vpack.c.b16 %v773, %v770
    %v783 = vpack.c.b16 %v777, %v774
    %v784 = vpack.c.b16 %v778, %v775
    %v785 = vpack.c.b16 %v779, %v776
    %792 = vmatprep.subr.bf16.mxu0 0
    %793 = vmatpush1.bf16.msra.mxu0 %v414
    %794 = vmatprep.subr.bf16.mxu0 0
    %795 = vmatpush1.bf16.msra.mxu0 %v415
    %796 = vmatprep.subr.bf16.mxu0 0
    %797 = vmatpush1.bf16.msra.mxu0 %v416
    %798 = vmatprep.subr.bf16.mxu0 0
    %799 = vmatpush1.bf16.msra.mxu0 %v417
    %800 = vmatprep.subr.bf16.mxu0 0
    %801 = vmatpush1.bf16.msra.mxu0 %v418
    %802 = vmatprep.subr.bf16.mxu0 0
    %803 = vmatpush1.bf16.msra.mxu0 %v419
    %804 = vmatprep.subr.bf16.mxu0 0
    %805 = vmatpush1.bf16.msra.mxu0 %v420
    %806 = vmatprep.subr.bf16.mxu0 0
    %807 = vmatpush1.bf16.msra.mxu0 %v421
    %808 = vmatprep.subr.bf16.mxu0 0
    %809 = vmatpush1.bf16.msra.mxu0 %v422
    %810 = vmatprep.subr.bf16.mxu0 0
    %811 = vmatpush1.bf16.msra.mxu0 %v423
    %812 = vmatprep.subr.bf16.mxu0 0
    %813 = vmatpush1.bf16.msra.mxu0 %v424
    %814 = vmatprep.subr.bf16.mxu0 0
    %815 = vmatpush1.bf16.msra.mxu0 %v425
    %816 = vmatprep.subr.bf16.mxu0 0
    %817 = vmatpush1.bf16.msra.mxu0 %v426
    %818 = vmatprep.subr.bf16.mxu0 0
    %819 = vmatpush1.bf16.msra.mxu0 %v427
    %820 = vmatprep.subr.bf16.mxu0 0
    %821 = vmatpush1.bf16.msra.mxu0 %v428
    %822 = vmatprep.subr.bf16.mxu0 0
    %823 = vmatpush1.bf16.msra.mxu0 %v429
    %824 = vmatprep.mubr.bf16.mxu0 %v781
    %825 = vmatmul.mubr.bf16.gmra.mrb[0].mxu0 %v780
    %v826 = vpop.f32.mrb[0].mxu0
    %v827 = vadd.f32 %v188, %v826
    %v828 = vpop.f32.mrb[0].mxu0
    %v829 = vpop.f32.mrb[0].mxu0
    %v830 = vadd.f32 %v188, %v829
    %v831 = vpop.f32.mrb[0].mxu0
    %832 = vmatprep.mubr.bf16.mxu0 %v784
    %833 = vmatmul.mubr.bf16.gmra.mrb[0].mxu0 %v783
    %v834 = vpop.f32.mrb[0].mxu0
    %v835 = vadd.f32 %v188, %v834
    %v836 = vpop.f32.mrb[0].mxu0
    %v837 = vpop.f32.mrb[0].mxu0
    %v838 = vadd.f32 %v188, %v837
    %v839 = vpop.f32.mrb[0].mxu0
    %840 = vdwg.mxu0
    %841 = vmatprep.subr.bf16.mxu0 0
    %842 = vmatpush1.bf16.msra.mxu0 %v430
    %843 = vmatprep.subr.bf16.mxu0 0
    %844 = vmatpush1.bf16.msra.mxu0 %v431
    %845 = vmatprep.subr.bf16.mxu0 0
    %846 = vmatpush1.bf16.msra.mxu0 %v432
    %847 = vmatprep.subr.bf16.mxu0 0
    %848 = vmatpush1.bf16.msra.mxu0 %v433
    %849 = vmatprep.subr.bf16.mxu0 0
    %850 = vmatpush1.bf16.msra.mxu0 %v434
    %851 = vmatprep.subr.bf16.mxu0 0
    %852 = vmatpush1.bf16.msra.mxu0 %v435
    %853 = vmatprep.subr.bf16.mxu0 0
    %854 = vmatpush1.bf16.msra.mxu0 %v436
    %855 = vmatprep.subr.bf16.mxu0 0
    %856 = vmatpush1.bf16.msra.mxu0 %v437
    %857 = vmatprep.subr.bf16.mxu0 0
    %858 = vmatpush1.bf16.msra.mxu0 0
    %859 = vmatprep.subr.bf16.mxu0 0
    %860 = vmatpush1.bf16.msra.mxu0 0
    %861 = vmatprep.subr.bf16.mxu0 0
    %862 = vmatpush1.bf16.msra.mxu0 0
    %863 = vmatprep.subr.bf16.mxu0 0
    %864 = vmatpush1.bf16.msra.mxu0 0
    %865 = vmatprep.subr.bf16.mxu0 0
    %866 = vmatpush1.bf16.msra.mxu0 0
    %867 = vmatprep.subr.bf16.mxu0 0
    %868 = vmatpush1.bf16.msra.mxu0 0
    %869 = vmatprep.subr.bf16.mxu0 0
    %870 = vmatpush1.bf16.msra.mxu0 0
    %871 = vmatprep.subr.bf16.mxu0 0
    %872 = vmatpush1.bf16.msra.mxu0 0
    %873 = vmatprep.mubr.bf16.mxu0 0
    %874 = vmatmul.mubr.bf16.gmra.mrb[0].mxu0 %v782
    %v875 = vpop.f32.mrb[0].mxu0
    %v876 = vadd.f32 %v827, %v875
    %v877 = vpop.f32.mrb[0].mxu0
    %v878 = vpop.f32.mrb[0].mxu0
    %v879 = vadd.f32 %v830, %v878
    %v880 = vpop.f32.mrb[0].mxu0
    %881 = vmatprep.mubr.bf16.mxu0 0
    %882 = vmatmul.mubr.bf16.gmra.mrb[0].mxu0 %v785
    %v883 = vpop.f32.mrb[0].mxu0
    %v884 = vadd.f32 %v835, %v883
    %v885 = vpop.f32.mrb[0].mxu0
    %v886 = vpop.f32.mrb[0].mxu0
    %v887 = vadd.f32 %v838, %v886
    %v888 = vpop.f32.mrb[0].mxu0
    %889 = vdwg.mxu0
    %v890 = vmul.f32 %v876, 0.2
    %v891 = vmul.f32 %v879, 0.2
    %v892 = vmul.f32 %v884, 0.2
    %v893 = vmul.f32 %v887, 0.2
    %v894 = vmax.f32 %v876, %v890
    %v895 = vmax.f32 %v879, %v891
    %v896 = vmax.f32 %v884, %v892
    %v897 = vmax.f32 %v887, %v893
    %v898 = vpack.c.bf16 %v895, %v894
    %v899 = vpack.c.bf16 %v897, %v896
    %v902 = vunpack.c.l.b16 %v898
    %v903 = vunpack.c.h.b16 %v898
    %v904 = vunpack.c.l.b16 %v899
    %v905 = vunpack.c.h.b16 %v899
    %v906 = vpack.c.b16 %v902, %v902
    %v907 = vpack.c.b16 %v903, %v903
    %v908 = vpack.c.b16 %v904, %v904
    %v909 = vpack.c.b16 %v905, %v905
    %v915 = vshrl.u32 %v906, 16
    %v917 = vrot.slane %v915, 7
    %v918 = vshll.u32 %v906, 16
    %v920 = vor.u32 %v917, %v918
    %v922 = vshrl.u32 %v720, 16
    %v924 = vrot.slane %v922, 7
    %v925 = vshll.u32 %v720, 16
    %v927 = vor.u32 %v924, %v925
    %v929 = vshrl.u32 %v721, 16
    %v931 = vrot.slane %v929, 7
    %v932 = vshll.u32 %v721, 16
    %v934 = vor.u32 %v931, %v932
    %v936 = vshrl.u32 %v722, 16
    %v938 = vrot.slane %v936, 7
    %v939 = vshll.u32 %v722, 16
    %v941 = vor.u32 %v938, %v939
    %v943 = vshrl.u32 %v723, 16
    %v945 = vrot.slane %v943, 7
    %v946 = vshll.u32 %v723, 16
    %v948 = vor.u32 %v945, %v946
    %v950 = vshrl.u32 %v724, 16
    %v952 = vrot.slane %v950, 7
    %v953 = vshll.u32 %v724, 16
    %v955 = vor.u32 %v952, %v953
    %v957 = vshrl.u32 %v725, 16
    %v959 = vrot.slane %v957, 7
    %v960 = vshll.u32 %v725, 16
    %v962 = vor.u32 %v959, %v960
    %v964 = vshrl.u32 %v726, 16
    %v966 = vrot.slane %v964, 7
    %v967 = vshll.u32 %v726, 16
    %v969 = vor.u32 %v966, %v967
    %v971 = vshrl.u32 %v727, 16
    %v973 = vrot.slane %v971, 7
    %v974 = vshll.u32 %v727, 16
    %v976 = vor.u32 %v973, %v974
    %v978 = vshrl.u32 %v907, 16
    %v980 = vrot.slane %v978, 7
    %v981 = vshll.u32 %v907, 16
    %v983 = vor.u32 %v980, %v981
    %v985 = vshrl.u32 %v908, 16
    %v987 = vrot.slane %v985, 7
    %v988 = vshll.u32 %v908, 16
    %v990 = vor.u32 %v987, %v988
    %v992 = vshrl.u32 %v728, 16
    %v994 = vrot.slane %v992, 7
    %v995 = vshll.u32 %v728, 16
    %v997 = vor.u32 %v994, %v995
    %v999 = vshrl.u32 %v729, 16
    %v1001 = vrot.slane %v999, 7
    %v1002 = vshll.u32 %v729, 16
    %v1004 = vor.u32 %v1001, %v1002
    %v1006 = vshrl.u32 %v730, 16
    %v1008 = vrot.slane %v1006, 7
    %v1009 = vshll.u32 %v730, 16
    %v1011 = vor.u32 %v1008, %v1009
    %v1013 = vshrl.u32 %v731, 16
    %v1015 = vrot.slane %v1013, 7
    %v1016 = vshll.u32 %v731, 16
    %v1018 = vor.u32 %v1015, %v1016
    %v1020 = vshrl.u32 %v732, 16
    %v1022 = vrot.slane %v1020, 7
    %v1023 = vshll.u32 %v732, 16
    %v1025 = vor.u32 %v1022, %v1023
    %v1027 = vshrl.u32 %v733, 16
    %v1029 = vrot.slane %v1027, 7
    %v1030 = vshll.u32 %v733, 16
    %v1032 = vor.u32 %v1029, %v1030
    %v1034 = vshrl.u32 %v734, 16
    %v1036 = vrot.slane %v1034, 7
    %v1037 = vshll.u32 %v734, 16
    %v1039 = vor.u32 %v1036, %v1037
    %v1041 = vshrl.u32 %v735, 16
    %v1043 = vrot.slane %v1041, 7
    %v1044 = vshll.u32 %v735, 16
    %v1046 = vor.u32 %v1043, %v1044
    %v1048 = vshrl.u32 %v909, 16
    %v1050 = vrot.slane %v1048, 7
    %v1051 = vshll.u32 %v909, 16
    %v1053 = vor.u32 %v1050, %v1051
    %v1074 = vrot.slane %v906, 7
    %v1075 = vrot.slane %v720, 7
    %v1076 = vrot.slane %v721, 7
    %v1077 = vrot.slane %v722, 7
    %v1078 = vrot.slane %v723, 7
    %v1079 = vrot.slane %v724, 7
    %v1080 = vrot.slane %v725, 7
    %v1081 = vrot.slane %v726, 7
    %v1082 = vrot.slane %v727, 7
    %v1083 = vrot.slane %v907, 7
    %v1084 = vrot.slane %v908, 7
    %v1085 = vrot.slane %v728, 7
    %v1086 = vrot.slane %v729, 7
    %v1087 = vrot.slane %v730, 7
    %v1088 = vrot.slane %v731, 7
    %v1089 = vrot.slane %v732, 7
    %v1090 = vrot.slane %v733, 7
    %v1091 = vrot.slane %v734, 7
    %v1092 = vrot.slane %v735, 7
    %v1093 = vrot.slane %v909, 7
    %vm1114 = vcmask 1040384
    %vm1115 = vsmask.f32 256
    %vm1116 = vmand %vm1114, %vm1115
    %v1117 = vsel %vm1116, %v906, %v920
    %v1118 = vsel %vm1116, %v720, %v927
    %v1119 = vsel %vm1116, %v721, %v934
    %v1120 = vsel %vm1116, %v722, %v941
    %v1121 = vsel %vm1116, %v723, %v948
    %v1122 = vsel %vm1116, %v724, %v955
    %v1123 = vsel %vm1116, %v725, %v962
    %v1124 = vsel %vm1116, %v726, %v969
    %v1125 = vsel %vm1116, %v727, %v976
    %v1126 = vsel %vm1116, %v907, %v983
    %v1127 = vsel %vm1116, %v908, %v990
    %v1128 = vsel %vm1116, %v728, %v997
    %v1129 = vsel %vm1116, %v729, %v1004
    %v1130 = vsel %vm1116, %v730, %v1011
    %v1131 = vsel %vm1116, %v731, %v1018
    %v1132 = vsel %vm1116, %v732, %v1025
    %v1133 = vsel %vm1116, %v733, %v1032
    %v1134 = vsel %vm1116, %v734, %v1039
    %v1135 = vsel %vm1116, %v735, %v1046
    %v1136 = vsel %vm1116, %v909, %v1053
    %vm1137 = vcmask 1044480
    %vm1138 = vsmask.f32 4352
    %vm1139 = vmand %vm1137, %vm1138
    %v1140 = vsel %vm1139, %v1117, %v1074
    %v1141 = vsel %vm1139, %v1118, %v1075
    %v1142 = vsel %vm1139, %v1119, %v1076
    %v1143 = vsel %vm1139, %v1120, %v1077
    %v1144 = vsel %vm1139, %v1121, %v1078
    %v1145 = vsel %vm1139, %v1122, %v1079
    %v1146 = vsel %vm1139, %v1123, %v1080
    %v1147 = vsel %vm1139, %v1124, %v1081
    %v1148 = vsel %vm1139, %v1125, %v1082
    %v1149 = vsel %vm1139, %v1126, %v1083
    %v1150 = vsel %vm1139, %v1127, %v1084
    %v1151 = vsel %vm1139, %v1128, %v1085
    %v1152 = vsel %vm1139, %v1129, %v1086
    %v1153 = vsel %vm1139, %v1130, %v1087
    %v1154 = vsel %vm1139, %v1131, %v1088
    %v1155 = vsel %vm1139, %v1132, %v1089
    %v1156 = vsel %vm1139, %v1133, %v1090
    %v1157 = vsel %vm1139, %v1134, %v1091
    %v1158 = vsel %vm1139, %v1135, %v1092
    %v1159 = vsel %vm1139, %v1136, %v1093
    %v1161 = vshrl.u32 %v1140, 16
    %v1163 = vshll.u32 %v1140, 16
    %v1165 = vrot.slane %v1163, 1
    %v1166 = vor.u32 %v1161, %v1165
    %v1168 = vshrl.u32 %v1141, 16
    %v1170 = vshll.u32 %v1141, 16
    %v1172 = vrot.slane %v1170, 1
    %v1173 = vor.u32 %v1168, %v1172
    %v1175 = vshrl.u32 %v1142, 16
    %v1177 = vshll.u32 %v1142, 16
    %v1179 = vrot.slane %v1177, 1
    %v1180 = vor.u32 %v1175, %v1179
    %v1182 = vshrl.u32 %v1143, 16
    %v1184 = vshll.u32 %v1143, 16
    %v1186 = vrot.slane %v1184, 1
    %v1187 = vor.u32 %v1182, %v1186
    %v1189 = vshrl.u32 %v1144, 16
    %v1191 = vshll.u32 %v1144, 16
    %v1193 = vrot.slane %v1191, 1
    %v1194 = vor.u32 %v1189, %v1193
    %v1196 = vshrl.u32 %v1145, 16
    %v1198 = vshll.u32 %v1145, 16
    %v1200 = vrot.slane %v1198, 1
    %v1201 = vor.u32 %v1196, %v1200
    %v1203 = vshrl.u32 %v1146, 16
    %v1205 = vshll.u32 %v1146, 16
    %v1207 = vrot.slane %v1205, 1
    %v1208 = vor.u32 %v1203, %v1207
    %v1210 = vshrl.u32 %v1147, 16
    %v1212 = vshll.u32 %v1147, 16
    %v1214 = vrot.slane %v1212, 1
    %v1215 = vor.u32 %v1210, %v1214
    %v1217 = vshrl.u32 %v1150, 16
    %v1219 = vshll.u32 %v1150, 16
    %v1221 = vrot.slane %v1219, 1
    %v1222 = vor.u32 %v1217, %v1221
    %v1224 = vshrl.u32 %v1151, 16
    %v1226 = vshll.u32 %v1151, 16
    %v1228 = vrot.slane %v1226, 1
    %v1229 = vor.u32 %v1224, %v1228
    %v1231 = vshrl.u32 %v1152, 16
    %v1233 = vshll.u32 %v1152, 16
    %v1235 = vrot.slane %v1233, 1
    %v1236 = vor.u32 %v1231, %v1235
    %v1238 = vshrl.u32 %v1153, 16
    %v1240 = vshll.u32 %v1153, 16
    %v1242 = vrot.slane %v1240, 1
    %v1243 = vor.u32 %v1238, %v1242
    %v1245 = vshrl.u32 %v1154, 16
    %v1247 = vshll.u32 %v1154, 16
    %v1249 = vrot.slane %v1247, 1
    %v1250 = vor.u32 %v1245, %v1249
    %v1252 = vshrl.u32 %v1155, 16
    %v1254 = vshll.u32 %v1155, 16
    %v1256 = vrot.slane %v1254, 1
    %v1257 = vor.u32 %v1252, %v1256
    %v1259 = vshrl.u32 %v1156, 16
    %v1261 = vshll.u32 %v1156, 16
    %v1263 = vrot.slane %v1261, 1
    %v1264 = vor.u32 %v1259, %v1263
    %v1266 = vshrl.u32 %v1157, 16
    %v1268 = vshll.u32 %v1157, 16
    %v1270 = vrot.slane %v1268, 1
    %v1271 = vor.u32 %v1266, %v1270
    %v1288 = vrot.slane %v1140, 1
    %v1289 = vrot.slane %v1141, 1
    %v1290 = vrot.slane %v1142, 1
    %v1291 = vrot.slane %v1143, 1
    %v1292 = vrot.slane %v1144, 1
    %v1293 = vrot.slane %v1145, 1
    %v1294 = vrot.slane %v1146, 1
    %v1295 = vrot.slane %v1147, 1
    %v1296 = vrot.slane %v1150, 1
    %v1297 = vrot.slane %v1151, 1
    %v1298 = vrot.slane %v1152, 1
    %v1299 = vrot.slane %v1153, 1
    %v1300 = vrot.slane %v1154, 1
    %v1301 = vrot.slane %v1155, 1
    %v1302 = vrot.slane %v1156, 1
    %v1303 = vrot.slane %v1157, 1
    %v1305 = vshrl.u32 %v1148, 16
    %v1307 = vshll.u32 %v1148, 16
    %v1309 = vrot.slane %v1307, 1
    %v1310 = vor.u32 %v1305, %v1309
    %v1312 = vshrl.u32 %v1158, 16
    %v1314 = vshll.u32 %v1158, 16
    %v1316 = vrot.slane %v1314, 1
    %v1317 = vor.u32 %v1312, %v1316
    %v1320 = vrot.slane %v1148, 1
    %v1321 = vrot.slane %v1158, 1
    %v1323 = vshrl.u32 %v1149, 16
    %v1325 = vshll.u32 %v1149, 16
    %v1327 = vrot.slane %v1325, 1
    %v1328 = vor.u32 %v1323, %v1327
    %v1330 = vshrl.u32 %v1159, 16
    %v1332 = vshll.u32 %v1159, 16
    %v1334 = vrot.slane %v1332, 1
    %v1335 = vor.u32 %v1330, %v1334
    %v1338 = vrot.slane %v1149, 1
    %v1339 = vrot.slane %v1159, 1
    %v1340 = vunpack.c.l.b16 %v1140
    %v1341 = vunpack.c.l.b16 %v1166
    %v1342 = vunpack.c.l.b16 %v1288
    %v1343 = vunpack.c.l.b16 %v1141
    %v1344 = vunpack.c.l.b16 %v1173
    %v1345 = vunpack.c.l.b16 %v1289
    %v1346 = vunpack.c.l.b16 %v1142
    %v1347 = vunpack.c.l.b16 %v1180
    %v1348 = vunpack.c.l.b16 %v1290
    %v1349 = vunpack.c.l.b16 %v1143
    %v1350 = vunpack.c.l.b16 %v1187
    %v1351 = vunpack.c.l.b16 %v1291
    %v1352 = vunpack.c.l.b16 %v1144
    %v1353 = vunpack.c.l.b16 %v1194
    %v1354 = vunpack.c.l.b16 %v1292
    %v1355 = vunpack.c.l.b16 %v1145
    %v1356 = vunpack.c.l.b16 %v1201
    %v1357 = vunpack.c.l.b16 %v1293
    %v1358 = vunpack.c.l.b16 %v1146
    %v1359 = vunpack.c.l.b16 %v1208
    %v1360 = vunpack.c.l.b16 %v1294
    %v1361 = vunpack.c.l.b16 %v1147
    %v1362 = vunpack.c.l.b16 %v1215
    %v1363 = vunpack.c.l.b16 %v1295
    %v1364 = vunpack.c.l.b16 %v1148
    %v1365 = vunpack.c.l.b16 %v1310
    %v1366 = vunpack.c.l.b16 %v1320
    %v1367 = vunpack.c.l.b16 %v1149
    %v1368 = vunpack.c.l.b16 %v1328
    %v1369 = vunpack.c.l.b16 %v1338
    %v1370 = vunpack.c.l.b16 %v1150
    %v1371 = vunpack.c.l.b16 %v1222
    %v1372 = vunpack.c.l.b16 %v1296
    %v1373 = vunpack.c.l.b16 %v1151
    %v1374 = vunpack.c.l.b16 %v1229
    %v1375 = vunpack.c.l.b16 %v1297
    %v1376 = vunpack.c.l.b16 %v1152
    %v1377 = vunpack.c.l.b16 %v1236
    %v1378 = vunpack.c.l.b16 %v1298
    %v1379 = vunpack.c.l.b16 %v1153
    %v1380 = vunpack.c.l.b16 %v1243
    %v1381 = vunpack.c.l.b16 %v1299
    %v1382 = vunpack.c.l.b16 %v1154
    %v1383 = vunpack.c.l.b16 %v1250
    %v1384 = vunpack.c.l.b16 %v1300
    %v1385 = vunpack.c.l.b16 %v1155
    %v1386 = vunpack.c.l.b16 %v1257
    %v1387 = vunpack.c.l.b16 %v1301
    %v1388 = vunpack.c.l.b16 %v1156
    %v1389 = vunpack.c.l.b16 %v1264
    %v1390 = vunpack.c.l.b16 %v1302
    %v1391 = vunpack.c.l.b16 %v1157
    %v1392 = vunpack.c.l.b16 %v1271
    %v1393 = vunpack.c.l.b16 %v1303
    %v1394 = vunpack.c.l.b16 %v1158
    %v1395 = vunpack.c.l.b16 %v1317
    %v1396 = vunpack.c.l.b16 %v1321
    %v1397 = vunpack.c.l.b16 %v1159
    %v1398 = vunpack.c.l.b16 %v1335
    %v1399 = vunpack.c.l.b16 %v1339
    %v1400 = vld [vmem:[#allocation10] sm:$0xf]
    %v1401 = vld [vmem:[#allocation10 + $0x4] sm:$0xf]
    %v1402 = vld [vmem:[#allocation10 + $0x8] sm:$0xf]
    %v1403 = vld [vmem:[#allocation10 + $0xc] sm:$0xf]
    %v1404 = vld [vmem:[#allocation10 + $0x10] sm:$0xf]
    %v1405 = vld [vmem:[#allocation10 + $0x14] sm:$0xf]
    %v1406 = vld [vmem:[#allocation10 + $0x18] sm:$0xf]
    %v1407 = vld [vmem:[#allocation10 + $0x1c] sm:$0xf]
    %v1408 = vld [vmem:[#allocation10 + $0x20] sm:$0xf]
    %v1409 = vld [vmem:[#allocation10 + $0x24] sm:$0xf]
    %v1410 = vld [vmem:[#allocation10 + $0x28] sm:$0xf]
    %v1411 = vld [vmem:[#allocation10 + $0x2c] sm:$0xf]
    %v1412 = vld [vmem:[#allocation10 + $0x30] sm:$0xf]
    %v1413 = vld [vmem:[#allocation10 + $0x34] sm:$0xf]
    %v1414 = vld [vmem:[#allocation10 + $0x38] sm:$0xf]
    %v1415 = vld [vmem:[#allocation10 + $0x3c] sm:$0xf]
    %v1416 = vld [vmem:[#allocation10 + $0x40] sm:$0xf]
    %v1417 = vld [vmem:[#allocation10 + $0x44] sm:$0xf]
    %v1418 = vld [vmem:[#allocation10 + $0x48] sm:$0xf]
    %v1419 = vld [vmem:[#allocation10 + $0x4c] sm:$0xf]
    %v1420 = vld [vmem:[#allocation10 + $0x50] sm:$0xf]
    %v1421 = vld [vmem:[#allocation10 + $0x54] sm:$0xf]
    %v1422 = vld [vmem:[#allocation10 + $0x58] sm:$0xf]
    %v1423 = vld [vmem:[#allocation10 + $0x5c] sm:$0xf]
    %v1424 = vld [vmem:[#allocation10 + $0x60] sm:$0xf]
    %v1425 = vld [vmem:[#allocation10 + $0x64] sm:$0xf]
    %v1426 = vld [vmem:[#allocation10 + $0x68] sm:$0xf]
    %v1427 = vld [vmem:[#allocation10 + $0x6c] sm:$0xf]
    %v1428 = vld [vmem:[#allocation10 + $0x70] sm:$0xf]
    %v1429 = vld [vmem:[#allocation10 + $0x74] sm:$0xf]
    %v1430 = vld [vmem:[#allocation10 + $0x78] sm:$0xf]
    %v1431 = vld [vmem:[#allocation10 + $0x7c] sm:$0xf]
    %v1432 = vld [vmem:[#allocation10 + $0x80] sm:$0xf]
    %v1433 = vld [vmem:[#allocation10 + $0x84] sm:$0xf]
    %v1434 = vld [vmem:[#allocation10 + $0x88] sm:$0xf]
    %v1435 = vld [vmem:[#allocation10 + $0x8c] sm:$0xf]
    %v1436 = vld [vmem:[#allocation10 + $0x90] sm:$0xf]
    %v1437 = vld [vmem:[#allocation10 + $0x94] sm:$0xf]
    %v1438 = vld [vmem:[#allocation10 + $0x98] sm:$0xf]
    %v1439 = vld [vmem:[#allocation10 + $0x9c] sm:$0xf]
    %v1440 = vld [vmem:[#allocation10 + $0xa0] sm:$0xf]
    %v1441 = vld [vmem:[#allocation10 + $0xa4] sm:$0xf]
    %v1442 = vld [vmem:[#allocation10 + $0xa8] sm:$0xf]
    %v1443 = vld [vmem:[#allocation10 + $0xac] sm:$0xf]
    %v1444 = vld [vmem:[#allocation10 + $0xb0] sm:$0xf]
    %v1445 = vld [vmem:[#allocation10 + $0xb4] sm:$0xf]
    %v1446 = vld [vmem:[#allocation10 + $0xb8] sm:$0xf]
    %v1447 = vld [vmem:[#allocation10 + $0xbc] sm:$0xf]
    %v1448 = vld [vmem:[#allocation10 + $0xc0] sm:$0xf]
    %v1449 = vld [vmem:[#allocation10 + $0xc4] sm:$0xf]
    %v1450 = vld [vmem:[#allocation10 + $0xc8] sm:$0xf]
    %v1451 = vld [vmem:[#allocation10 + $0xcc] sm:$0xf]
    %v1452 = vld [vmem:[#allocation10 + $0xd0] sm:$0xf]
    %v1453 = vld [vmem:[#allocation10 + $0xd4] sm:$0xf]
    %v1454 = vld [vmem:[#allocation10 + $0xd8] sm:$0xf]
    %v1455 = vld [vmem:[#allocation10 + $0xdc] sm:$0xf]
    %v1456 = vld [vmem:[#allocation10 + $0xe0] sm:$0xf]
    %v1457 = vld [vmem:[#allocation10 + $0xe4] sm:$0xf]
    %v1458 = vld [vmem:[#allocation10 + $0xe8] sm:$0xf]
    %v1459 = vld [vmem:[#allocation10 + $0xec] sm:$0xf]
    %v1460 = vld [vmem:[#allocation10 + $0xf0] sm:$0xf]
    %v1461 = vld [vmem:[#allocation10 + $0xf4] sm:$0xf]
    %v1462 = vld [vmem:[#allocation10 + $0xf8] sm:$0xf]
    %v1463 = vld [vmem:[#allocation10 + $0xfc] sm:$0xf]
    %v1464 = vld [vmem:[#allocation10 + $0x100] sm:$0xf]
    %v1465 = vld [vmem:[#allocation10 + $0x104] sm:$0xf]
    %v1466 = vld [vmem:[#allocation10 + $0x108] sm:$0xf]
    %v1467 = vld [vmem:[#allocation10 + $0x10c] sm:$0xf]
    %v1468 = vld [vmem:[#allocation10 + $0x110] sm:$0xf]
    %v1469 = vld [vmem:[#allocation10 + $0x114] sm:$0xf]
    %v1470 = vld [vmem:[#allocation10 + $0x118] sm:$0xf]
    %v1471 = vld [vmem:[#allocation10 + $0x11c] sm:$0xf]
    %v1472 = vld [vmem:[#allocation10 + $0x120] sm:$0xf]
    %v1473 = vld [vmem:[#allocation10 + $0x124] sm:$0xf]
    %v1474 = vld [vmem:[#allocation10 + $0x128] sm:$0xf]
    %v1475 = vld [vmem:[#allocation10 + $0x12c] sm:$0xf]
    %v1476 = vld [vmem:[#allocation10 + $0x130] sm:$0xf]
    %v1477 = vld [vmem:[#allocation10 + $0x134] sm:$0xf]
    %v1478 = vld [vmem:[#allocation10 + $0x138] sm:$0xf]
    %v1479 = vld [vmem:[#allocation10 + $0x13c] sm:$0xf]
    %v1480 = vld [vmem:[#allocation10 + $0x140] sm:$0xf]
    %v1481 = vld [vmem:[#allocation10 + $0x144] sm:$0xf]
    %v1482 = vld [vmem:[#allocation10 + $0x148] sm:$0xf]
    %v1483 = vld [vmem:[#allocation10 + $0x14c] sm:$0xf]
    %v1484 = vld [vmem:[#allocation10 + $0x150] sm:$0xf]
    %v1485 = vld [vmem:[#allocation10 + $0x154] sm:$0xf]
    %v1486 = vld [vmem:[#allocation10 + $0x158] sm:$0xf]
    %v1487 = vld [vmem:[#allocation10 + $0x15c] sm:$0xf]
    %v1488 = vld [vmem:[#allocation10 + $0x160] sm:$0xf]
    %v1489 = vld [vmem:[#allocation10 + $0x164] sm:$0xf]
    %v1490 = vld [vmem:[#allocation10 + $0x168] sm:$0xf]
    %v1491 = vld [vmem:[#allocation10 + $0x16c] sm:$0xf]
    %v1492 = vld [vmem:[#allocation10 + $0x170] sm:$0xf]
    %v1493 = vld [vmem:[#allocation10 + $0x174] sm:$0xf]
    %v1494 = vld [vmem:[#allocation10 + $0x178] sm:$0xf]
    %v1495 = vld [vmem:[#allocation10 + $0x17c] sm:$0xf]
    %v1496 = vld [vmem:[#allocation10 + $0x180] sm:$0xf]
    %v1497 = vld [vmem:[#allocation10 + $0x184] sm:$0xf]
    %v1498 = vld [vmem:[#allocation10 + $0x188] sm:$0xf]
    %v1499 = vld [vmem:[#allocation10 + $0x18c] sm:$0xf]
    %v1500 = vld [vmem:[#allocation10 + $0x190] sm:$0xf]
    %v1501 = vld [vmem:[#allocation10 + $0x194] sm:$0xf]
    %v1502 = vld [vmem:[#allocation10 + $0x198] sm:$0xf]
    %v1503 = vld [vmem:[#allocation10 + $0x19c] sm:$0xf]
    %v1504 = vld [vmem:[#allocation10 + $0x1a0] sm:$0xf]
    %v1505 = vld [vmem:[#allocation10 + $0x1a4] sm:$0xf]
    %v1506 = vld [vmem:[#allocation10 + $0x1a8] sm:$0xf]
    %v1507 = vld [vmem:[#allocation10 + $0x1ac] sm:$0xf]
    %v1508 = vld [vmem:[#allocation10 + $0x1b0] sm:$0xf]
    %v1509 = vld [vmem:[#allocation10 + $0x1b4] sm:$0xf]
    %v1510 = vld [vmem:[#allocation10 + $0x1b8] sm:$0xf]
    %v1511 = vld [vmem:[#allocation10 + $0x1bc] sm:$0xf]
    %v1512 = vld [vmem:[#allocation10 + $0x1c0] sm:$0xf]
    %v1513 = vld [vmem:[#allocation10 + $0x1c4] sm:$0xf]
    %v1514 = vld [vmem:[#allocation10 + $0x1c8] sm:$0xf]
    %v1515 = vld [vmem:[#allocation10 + $0x1cc] sm:$0xf]
    %v1516 = vld [vmem:[#allocation10 + $0x1d0] sm:$0xf]
    %v1517 = vld [vmem:[#allocation10 + $0x1d4] sm:$0xf]
    %v1518 = vld [vmem:[#allocation10 + $0x1d8] sm:$0xf]
    %v1519 = vld [vmem:[#allocation10 + $0x1dc] sm:$0xf]
    %v1520 = vld [vmem:[#allocation10 + $0x1e0] sm:$0xf]
    %v1521 = vld [vmem:[#allocation10 + $0x1e4] sm:$0xf]
    %v1522 = vld [vmem:[#allocation10 + $0x1e8] sm:$0xf]
    %v1523 = vld [vmem:[#allocation10 + $0x1ec] sm:$0xf]
    %v1524 = vld [vmem:[#allocation10 + $0x1f0] sm:$0xf]
    %v1525 = vld [vmem:[#allocation10 + $0x1f4] sm:$0xf]
    %v1526 = vld [vmem:[#allocation10 + $0x1f8] sm:$0xf]
    %v1527 = vld [vmem:[#allocation10 + $0x1fc] sm:$0xf]
    %v1528 = vld [vmem:[#allocation10 + $0x200] sm:$0xf]
    %v1529 = vld [vmem:[#allocation10 + $0x204] sm:$0xf]
    %v1530 = vld [vmem:[#allocation10 + $0x208] sm:$0xf]
    %v1531 = vld [vmem:[#allocation10 + $0x20c] sm:$0xf]
    %v1532 = vld [vmem:[#allocation10 + $0x210] sm:$0xf]
    %v1533 = vld [vmem:[#allocation10 + $0x214] sm:$0xf]
    %v1534 = vld [vmem:[#allocation10 + $0x218] sm:$0xf]
    %v1535 = vld [vmem:[#allocation10 + $0x21c] sm:$0xf]
    %v1536 = vld [vmem:[#allocation10 + $0x220] sm:$0xf]
    %v1537 = vld [vmem:[#allocation10 + $0x224] sm:$0xf]
    %v1538 = vld [vmem:[#allocation10 + $0x228] sm:$0xf]
    %v1539 = vld [vmem:[#allocation10 + $0x22c] sm:$0xf]
    %v1540 = vld [vmem:[#allocation10 + $0x230] sm:$0xf]
    %v1541 = vld [vmem:[#allocation10 + $0x234] sm:$0xf]
    %v1542 = vld [vmem:[#allocation10 + $0x238] sm:$0xf]
    %v1543 = vld [vmem:[#allocation10 + $0x23c] sm:$0xf]
    %v1544 = vld [vmem:[#allocation11] sm:$0x1]
    %v1546 = vlaneseq
    %v1547 = vshrl.u32 %v1546, 7
    %v1548 = vsub.s32 0, %v1547
    %v1549 = vrot.slane %v1544, %v1548
    %v1551 = vpack.c.b16 %v1343, %v1340
    %v1552 = vpack.c.b16 %v1344, %v1341
    %v1553 = vpack.c.b16 %v1345, %v1342
    %v1554 = vpack.c.b16 %v1346, %v1343
    %v1555 = vpack.c.b16 %v1347, %v1344
    %v1556 = vpack.c.b16 %v1348, %v1345
    %v1557 = vpack.c.b16 %v1349, %v1346
    %v1558 = vpack.c.b16 %v1350, %v1347
    %v1559 = vpack.c.b16 %v1351, %v1348
    %v1560 = vpack.c.b16 %v1352, %v1349
    %v1561 = vpack.c.b16 %v1353, %v1350
    %v1562 = vpack.c.b16 %v1354, %v1351
    %v1563 = vpack.c.b16 %v1355, %v1352
    %v1564 = vpack.c.b16 %v1356, %v1353
    %v1565 = vpack.c.b16 %v1357, %v1354
    %v1566 = vpack.c.b16 %v1358, %v1355
    %v1567 = vpack.c.b16 %v1359, %v1356
    %v1568 = vpack.c.b16 %v1360, %v1357
    %v1569 = vpack.c.b16 %v1361, %v1358
    %v1570 = vpack.c.b16 %v1362, %v1359
    %v1571 = vpack.c.b16 %v1363, %v1360
    %v1572 = vpack.c.b16 %v1364, %v1361
    %v1573 = vpack.c.b16 %v1365, %v1362
    %v1574 = vpack.c.b16 %v1366, %v1363
    %v1575 = vpack.c.b16 %v1367, %v1364
    %v1576 = vpack.c.b16 %v1368, %v1365
    %v1577 = vpack.c.b16 %v1369, %v1366
    %v1578 = vpack.c.b16 %v1373, %v1370
    %v1579 = vpack.c.b16 %v1374, %v1371
    %v1580 = vpack.c.b16 %v1375, %v1372
    %v1581 = vpack.c.b16 %v1376, %v1373
    %v1582 = vpack.c.b16 %v1377, %v1374
    %v1583 = vpack.c.b16 %v1378, %v1375
    %v1584 = vpack.c.b16 %v1379, %v1376
    %v1585 = vpack.c.b16 %v1380, %v1377
    %v1586 = vpack.c.b16 %v1381, %v1378
    %v1587 = vpack.c.b16 %v1382, %v1379
    %v1588 = vpack.c.b16 %v1383, %v1380
    %v1589 = vpack.c.b16 %v1384, %v1381
    %v1590 = vpack.c.b16 %v1385, %v1382
    %v1591 = vpack.c.b16 %v1386, %v1383
    %v1592 = vpack.c.b16 %v1387, %v1384
    %v1593 = vpack.c.b16 %v1388, %v1385
    %v1594 = vpack.c.b16 %v1389, %v1386
    %v1595 = vpack.c.b16 %v1390, %v1387
    %v1596 = vpack.c.b16 %v1391, %v1388
    %v1597 = vpack.c.b16 %v1392, %v1389
    %v1598 = vpack.c.b16 %v1393, %v1390
    %v1599 = vpack.c.b16 %v1394, %v1391
    %v1600 = vpack.c.b16 %v1395, %v1392
    %v1601 = vpack.c.b16 %v1396, %v1393
    %v1602 = vpack.c.b16 %v1397, %v1394
    %v1603 = vpack.c.b16 %v1398, %v1395
    %v1604 = vpack.c.b16 %v1399, %v1396
    %v1803 = vunpack.c.l.b16 %v1400
    %v1804 = vunpack.c.l.b16 %v1401
    %v1805 = vunpack.c.l.b16 %v1402
    %v1806 = vunpack.c.l.b16 %v1403
    %v1807 = vunpack.c.l.b16 %v1404
    %v1808 = vunpack.c.l.b16 %v1405
    %v1809 = vunpack.c.l.b16 %v1406
    %v1810 = vunpack.c.l.b16 %v1407
    %v1811 = vunpack.c.l.b16 %v1408
    %v1812 = vunpack.c.l.b16 %v1409
    %v1813 = vunpack.c.l.b16 %v1410
    %v1814 = vunpack.c.l.b16 %v1411
    %v1815 = vunpack.c.l.b16 %v1412
    %v1816 = vunpack.c.l.b16 %v1413
    %v1817 = vunpack.c.l.b16 %v1414
    %v1818 = vunpack.c.l.b16 %v1415
    %v1819 = vunpack.c.l.b16 %v1416
    %v1820 = vunpack.c.l.b16 %v1417
    %v1821 = vunpack.c.l.b16 %v1418
    %v1822 = vunpack.c.l.b16 %v1419
    %v1823 = vunpack.c.l.b16 %v1420
    %v1824 = vunpack.c.l.b16 %v1421
    %v1825 = vunpack.c.l.b16 %v1422
    %v1826 = vunpack.c.l.b16 %v1423
    %v1827 = vunpack.c.l.b16 %v1424
    %v1828 = vunpack.c.l.b16 %v1425
    %v1829 = vunpack.c.l.b16 %v1426
    %v1830 = vunpack.c.l.b16 %v1427
    %v1831 = vunpack.c.l.b16 %v1428
    %v1832 = vunpack.c.l.b16 %v1429
    %v1833 = vunpack.c.l.b16 %v1430
    %v1834 = vunpack.c.l.b16 %v1431
    %v1835 = vunpack.c.l.b16 %v1432
    %v1836 = vunpack.c.l.b16 %v1433
    %v1837 = vunpack.c.l.b16 %v1434
    %v1838 = vunpack.c.l.b16 %v1435
    %v1839 = vunpack.c.l.b16 %v1436
    %v1840 = vunpack.c.l.b16 %v1437
    %v1841 = vunpack.c.l.b16 %v1438
    %v1842 = vunpack.c.l.b16 %v1439
    %v1843 = vunpack.c.l.b16 %v1440
    %v1844 = vunpack.c.l.b16 %v1441
    %v1845 = vunpack.c.l.b16 %v1442
    %v1846 = vunpack.c.l.b16 %v1443
    %v1847 = vunpack.c.l.b16 %v1444
    %v1848 = vunpack.c.l.b16 %v1445
    %v1849 = vunpack.c.l.b16 %v1446
    %v1850 = vunpack.c.l.b16 %v1447
    %v1851 = vunpack.c.l.b16 %v1448
    %v1852 = vunpack.c.l.b16 %v1449
    %v1853 = vunpack.c.l.b16 %v1450
    %v1854 = vunpack.c.l.b16 %v1451
    %v1855 = vunpack.c.l.b16 %v1452
    %v1856 = vunpack.c.l.b16 %v1453
    %v1857 = vunpack.c.l.b16 %v1454
    %v1858 = vunpack.c.l.b16 %v1455
    %v1859 = vunpack.c.l.b16 %v1456
    %v1860 = vunpack.c.l.b16 %v1457
    %v1861 = vunpack.c.l.b16 %v1458
    %v1862 = vunpack.c.l.b16 %v1459
    %v1863 = vunpack.c.l.b16 %v1460
    %v1864 = vunpack.c.l.b16 %v1461
    %v1865 = vunpack.c.l.b16 %v1462
    %v1866 = vunpack.c.l.b16 %v1463
    %v1867 = vunpack.c.l.b16 %v1464
    %v1868 = vunpack.c.l.b16 %v1465
    %v1869 = vunpack.c.l.b16 %v1466
    %v1870 = vunpack.c.l.b16 %v1467
    %v1871 = vunpack.c.l.b16 %v1468
    %v1872 = vunpack.c.l.b16 %v1469
    %v1873 = vunpack.c.l.b16 %v1470
    %v1874 = vunpack.c.l.b16 %v1471
    %v1875 = vunpack.c.l.b16 %v1472
    %v1876 = vunpack.c.l.b16 %v1473
    %v1877 = vunpack.c.l.b16 %v1474
    %v1878 = vunpack.c.l.b16 %v1475
    %v1879 = vunpack.c.l.b16 %v1476
    %v1880 = vunpack.c.l.b16 %v1477
    %v1881 = vunpack.c.l.b16 %v1478
    %v1882 = vunpack.c.l.b16 %v1479
    %v1883 = vunpack.c.l.b16 %v1480
    %v1884 = vunpack.c.l.b16 %v1481
    %v1885 = vunpack.c.l.b16 %v1482
    %v1886 = vunpack.c.l.b16 %v1483
    %v1887 = vunpack.c.l.b16 %v1484
    %v1888 = vunpack.c.l.b16 %v1485
    %v1889 = vunpack.c.l.b16 %v1486
    %v1890 = vunpack.c.l.b16 %v1487
    %v1891 = vunpack.c.l.b16 %v1488
    %v1892 = vunpack.c.l.b16 %v1489
    %v1893 = vunpack.c.l.b16 %v1490
    %v1894 = vunpack.c.l.b16 %v1491
    %v1895 = vunpack.c.l.b16 %v1492
    %v1896 = vunpack.c.l.b16 %v1493
    %v1897 = vunpack.c.l.b16 %v1494
    %v1898 = vunpack.c.l.b16 %v1495
    %v1899 = vunpack.c.l.b16 %v1496
    %v1900 = vunpack.c.l.b16 %v1497
    %v1901 = vunpack.c.l.b16 %v1498
    %v1902 = vunpack.c.l.b16 %v1499
    %v1903 = vunpack.c.l.b16 %v1500
    %v1904 = vunpack.c.l.b16 %v1501
    %v1905 = vunpack.c.l.b16 %v1502
    %v1906 = vunpack.c.l.b16 %v1503
    %v1907 = vunpack.c.l.b16 %v1504
    %v1908 = vunpack.c.l.b16 %v1505
    %v1909 = vunpack.c.l.b16 %v1506
    %v1910 = vunpack.c.l.b16 %v1507
    %v1911 = vunpack.c.l.b16 %v1508
    %v1912 = vunpack.c.l.b16 %v1509
    %v1913 = vunpack.c.l.b16 %v1510
    %v1914 = vunpack.c.l.b16 %v1511
    %v1915 = vunpack.c.l.b16 %v1512
    %v1916 = vunpack.c.l.b16 %v1513
    %v1917 = vunpack.c.l.b16 %v1514
    %v1918 = vunpack.c.l.b16 %v1515
    %v1919 = vunpack.c.l.b16 %v1516
    %v1920 = vunpack.c.l.b16 %v1517
    %v1921 = vunpack.c.l.b16 %v1518
    %v1922 = vunpack.c.l.b16 %v1519
    %v1923 = vunpack.c.l.b16 %v1520
    %v1924 = vunpack.c.l.b16 %v1521
    %v1925 = vunpack.c.l.b16 %v1522
    %v1926 = vunpack.c.l.b16 %v1523
    %v1927 = vunpack.c.l.b16 %v1524
    %v1928 = vunpack.c.l.b16 %v1525
    %v1929 = vunpack.c.l.b16 %v1526
    %v1930 = vunpack.c.l.b16 %v1527
    %v1931 = vunpack.c.l.b16 %v1528
    %v1932 = vunpack.c.l.b16 %v1529
    %v1933 = vunpack.c.l.b16 %v1530
    %v1934 = vunpack.c.l.b16 %v1531
    %v1935 = vunpack.c.l.b16 %v1532
    %v1936 = vunpack.c.l.b16 %v1533
    %v1937 = vunpack.c.l.b16 %v1534
    %v1938 = vunpack.c.l.b16 %v1535
    %v1939 = vunpack.c.l.b16 %v1536
    %v1940 = vunpack.c.l.b16 %v1537
    %v1941 = vunpack.c.l.b16 %v1538
    %v1942 = vunpack.c.l.b16 %v1539
    %v1943 = vunpack.c.l.b16 %v1540
    %v1944 = vunpack.c.l.b16 %v1541
    %v1945 = vunpack.c.l.b16 %v1542
    %v1946 = vunpack.c.l.b16 %v1543
    %v1947 = vpack.c.b16 %v1804, %v1803
    %v1948 = vpack.c.b16 %v1806, %v1805
    %v1949 = vpack.c.b16 %v1808, %v1807
    %v1950 = vpack.c.b16 %v1810, %v1809
    %v1951 = vpack.c.b16 %v1812, %v1811
    %v1952 = vpack.c.b16 %v1814, %v1813
    %v1953 = vpack.c.b16 %v1816, %v1815
    %v1954 = vpack.c.b16 %v1818, %v1817
    %v1955 = vpack.c.b16 %v1820, %v1819
    %v1956 = vpack.c.b16 %v1822, %v1821
    %v1957 = vpack.c.b16 %v1824, %v1823
    %v1958 = vpack.c.b16 %v1826, %v1825
    %v1959 = vpack.c.b16 %v1828, %v1827
    %v1960 = vpack.c.b16 %v1830, %v1829
    %v1961 = vpack.c.b16 %v1832, %v1831
    %v1962 = vpack.c.b16 %v1834, %v1833
    %v1963 = vpack.c.b16 %v1836, %v1835
    %v1964 = vpack.c.b16 %v1838, %v1837
    %v1965 = vpack.c.b16 %v1840, %v1839
    %v1966 = vpack.c.b16 %v1842, %v1841
    %v1967 = vpack.c.b16 %v1844, %v1843
    %v1968 = vpack.c.b16 %v1846, %v1845
    %v1969 = vpack.c.b16 %v1848, %v1847
    %v1970 = vpack.c.b16 %v1850, %v1849
    %v1971 = vpack.c.b16 %v1852, %v1851
    %v1972 = vpack.c.b16 %v1854, %v1853
    %v1973 = vpack.c.b16 %v1856, %v1855
    %v1974 = vpack.c.b16 %v1858, %v1857
    %v1975 = vpack.c.b16 %v1860, %v1859
    %v1976 = vpack.c.b16 %v1862, %v1861
    %v1977 = vpack.c.b16 %v1864, %v1863
    %v1978 = vpack.c.b16 %v1866, %v1865
    %v1979 = vpack.c.b16 %v1868, %v1867
    %v1980 = vpack.c.b16 %v1870, %v1869
    %v1981 = vpack.c.b16 %v1872, %v1871
    %v1982 = vpack.c.b16 %v1874, %v1873
    %v1983 = vpack.c.b16 %v1876, %v1875
    %v1984 = vpack.c.b16 %v1878, %v1877
    %v1985 = vpack.c.b16 %v1880, %v1879
    %v1986 = vpack.c.b16 %v1882, %v1881
    %v1987 = vpack.c.b16 %v1884, %v1883
    %v1988 = vpack.c.b16 %v1886, %v1885
    %v1989 = vpack.c.b16 %v1888, %v1887
    %v1990 = vpack.c.b16 %v1890, %v1889
    %v1991 = vpack.c.b16 %v1892, %v1891
    %v1992 = vpack.c.b16 %v1894, %v1893
    %v1993 = vpack.c.b16 %v1896, %v1895
    %v1994 = vpack.c.b16 %v1898, %v1897
    %v1995 = vpack.c.b16 %v1900, %v1899
    %v1996 = vpack.c.b16 %v1902, %v1901
    %v1997 = vpack.c.b16 %v1904, %v1903
    %v1998 = vpack.c.b16 %v1906, %v1905
    %v1999 = vpack.c.b16 %v1908, %v1907
    %v2000 = vpack.c.b16 %v1910, %v1909
    %v2001 = vpack.c.b16 %v1912, %v1911
    %v2002 = vpack.c.b16 %v1914, %v1913
    %v2003 = vpack.c.b16 %v1916, %v1915
    %v2004 = vpack.c.b16 %v1918, %v1917
    %v2005 = vpack.c.b16 %v1920, %v1919
    %v2006 = vpack.c.b16 %v1922, %v1921
    %v2007 = vpack.c.b16 %v1924, %v1923
    %v2008 = vpack.c.b16 %v1926, %v1925
    %v2009 = vpack.c.b16 %v1928, %v1927
    %v2010 = vpack.c.b16 %v1930, %v1929
    %v2011 = vpack.c.b16 %v1932, %v1931
    %v2012 = vpack.c.b16 %v1934, %v1933
    %v2013 = vpack.c.b16 %v1936, %v1935
    %v2014 = vpack.c.b16 %v1938, %v1937
    %v2015 = vpack.c.b16 %v1940, %v1939
    %v2016 = vpack.c.b16 %v1942, %v1941
    %v2017 = vpack.c.b16 %v1944, %v1943
    %v2018 = vpack.c.b16 %v1946, %v1945
    %2091 = vmatprep.subr.bf16.mxu0 0
    %2092 = vmatpush1.bf16.msra.mxu0 %v1947
    %2093 = vmatprep.subr.bf16.mxu0 0
    %2094 = vmatpush1.bf16.msra.mxu0 %v1948
    %2095 = vmatprep.subr.bf16.mxu0 0
    %2096 = vmatpush1.bf16.msra.mxu0 %v1949
    %2097 = vmatprep.subr.bf16.mxu0 0
    %2098 = vmatpush1.bf16.msra.mxu0 %v1950
    %2099 = vmatprep.subr.bf16.mxu0 0
    %2100 = vmatpush1.bf16.msra.mxu0 %v1951
    %2101 = vmatprep.subr.bf16.mxu0 0
    %2102 = vmatpush1.bf16.msra.mxu0 %v1952
    %2103 = vmatprep.subr.bf16.mxu0 0
    %2104 = vmatpush1.bf16.msra.mxu0 %v1953
    %2105 = vmatprep.subr.bf16.mxu0 0
    %2106 = vmatpush1.bf16.msra.mxu0 %v1954
    %2107 = vmatprep.subr.bf16.mxu0 0
    %2108 = vmatpush1.bf16.msra.mxu0 %v1955
    %2109 = vmatprep.subr.bf16.mxu0 0
    %2110 = vmatpush1.bf16.msra.mxu0 %v1956
    %2111 = vmatprep.subr.bf16.mxu0 0
    %2112 = vmatpush1.bf16.msra.mxu0 %v1957
    %2113 = vmatprep.subr.bf16.mxu0 0
    %2114 = vmatpush1.bf16.msra.mxu0 %v1958
    %2115 = vmatprep.subr.bf16.mxu0 0
    %2116 = vmatpush1.bf16.msra.mxu0 %v1959
    %2117 = vmatprep.subr.bf16.mxu0 0
    %2118 = vmatpush1.bf16.msra.mxu0 %v1960
    %2119 = vmatprep.subr.bf16.mxu0 0
    %2120 = vmatpush1.bf16.msra.mxu0 %v1961
    %2121 = vmatprep.subr.bf16.mxu0 0
    %2122 = vmatpush1.bf16.msra.mxu0 %v1962
    %2123 = vmatprep.mubr.bf16.mxu0 %v1552
    %2124 = vmatmul.mubr.bf16.gmra.mrb[0].mxu0 %v1551
    %v2125 = vpop.f32.mrb[0].mxu0
    %v2126 = vadd.f32 %v1549, %v2125
    %v2127 = vpop.f32.mrb[0].mxu0
    %v2128 = vpop.f32.mrb[0].mxu0
    %v2129 = vadd.f32 %v1549, %v2128
    %v2130 = vpop.f32.mrb[0].mxu0
    %2131 = vmatprep.mubr.bf16.mxu0 %v1558
    %2132 = vmatmul.mubr.bf16.gmra.mrb[0].mxu0 %v1557
    %v2133 = vpop.f32.mrb[0].mxu0
    %v2134 = vadd.f32 %v1549, %v2133
    %v2135 = vpop.f32.mrb[0].mxu0
    %v2136 = vpop.f32.mrb[0].mxu0
    %v2137 = vadd.f32 %v1549, %v2136
    %v2138 = vpop.f32.mrb[0].mxu0
    %2139 = vmatprep.mubr.bf16.mxu0 %v1564
    %2140 = vmatmul.mubr.bf16.gmra.mrb[0].mxu0 %v1563
    %v2141 = vpop.f32.mrb[0].mxu0
    %v2142 = vadd.f32 %v1549, %v2141
    %v2143 = vpop.f32.mrb[0].mxu0
    %v2144 = vpop.f32.mrb[0].mxu0
    %v2145 = vadd.f32 %v1549, %v2144
    %v2146 = vpop.f32.mrb[0].mxu0
    %2147 = vmatprep.mubr.bf16.mxu0 %v1570
    %2148 = vmatmul.mubr.bf16.gmra.mrb[0].mxu0 %v1569
    %v2149 = vpop.f32.mrb[0].mxu0
    %v2150 = vadd.f32 %v1549, %v2149
    %v2151 = vpop.f32.mrb[0].mxu0
    %v2152 = vpop.f32.mrb[0].mxu0
    %v2153 = vadd.f32 %v1549, %v2152
    %v2154 = vpop.f32.mrb[0].mxu0
    %2155 = vmatprep.mubr.bf16.mxu0 %v1579
    %2156 = vmatmul.mubr.bf16.gmra.mrb[0].mxu0 %v1578
    %v2157 = vpop.f32.mrb[0].mxu0
    %v2158 = vadd.f32 %v1549, %v2157
    %v2159 = vpop.f32.mrb[0].mxu0
    %v2160 = vpop.f32.mrb[0].mxu0
    %v2161 = vadd.f32 %v1549, %v2160
    %v2162 = vpop.f32.mrb[0].mxu0
    %2163 = vmatprep.mubr.bf16.mxu0 %v1585
    %2164 = vmatmul.mubr.bf16.gmra.mrb[0].mxu0 %v1584
    %v2165 = vpop.f32.mrb[0].mxu0
    %v2166 = vadd.f32 %v1549, %v2165
    %v2167 = vpop.f32.mrb[0].mxu0
    %v2168 = vpop.f32.mrb[0].mxu0
    %v2169 = vadd.f32 %v1549, %v2168
    %v2170 = vpop.f32.mrb[0].mxu0
    %2171 = vmatprep.mubr.bf16.mxu0 %v1591
    %2172 = vmatmul.mubr.bf16.gmra.mrb[0].mxu0 %v1590
    %v2173 = vpop.f32.mrb[0].mxu0
    %v2174 = vadd.f32 %v1549, %v2173
    %v2175 = vpop.f32.mrb[0].mxu0
    %v2176 = vpop.f32.mrb[0].mxu0
    %v2177 = vadd.f32 %v1549, %v2176
    %v2178 = vpop.f32.mrb[0].mxu0
    %2179 = vmatprep.mubr.bf16.mxu0 %v1597
    %2180 = vmatmul.mubr.bf16.gmra.mrb[0].mxu0 %v1596
    %v2181 = vpop.f32.mrb[0].mxu0
    %v2182 = vadd.f32 %v1549, %v2181
    %v2183 = vpop.f32.mrb[0].mxu0
    %v2184 = vpop.f32.mrb[0].mxu0
    %v2185 = vadd.f32 %v1549, %v2184
    %v2186 = vpop.f32.mrb[0].mxu0
    %2187 = vdwg.mxu0
    %2188 = vmatprep.subr.bf16.mxu0 0
    %2189 = vmatpush1.bf16.msra.mxu0 %v1963
    %2190 = vmatprep.subr.bf16.mxu0 0
    %2191 = vmatpush1.bf16.msra.mxu0 %v1964
    %2192 = vmatprep.subr.bf16.mxu0 0
    %2193 = vmatpush1.bf16.msra.mxu0 %v1965
    %2194 = vmatprep.subr.bf16.mxu0 0
    %2195 = vmatpush1.bf16.msra.mxu0 %v1966
    %2196 = vmatprep.subr.bf16.mxu0 0
    %2197 = vmatpush1.bf16.msra.mxu0 %v1967
    %2198 = vmatprep.subr.bf16.mxu0 0
    %2199 = vmatpush1.bf16.msra.mxu0 %v1968
    %2200 = vmatprep.subr.bf16.mxu0 0
    %2201 = vmatpush1.bf16.msra.mxu0 %v1969
    %2202 = vmatprep.subr.bf16.mxu0 0
    %2203 = vmatpush1.bf16.msra.mxu0 %v1970
    %2204 = vmatprep.subr.bf16.mxu0 0
    %2205 = vmatpush1.bf16.msra.mxu0 %v1971
    %2206 = vmatprep.subr.bf16.mxu0 0
    %2207 = vmatpush1.bf16.msra.mxu0 %v1972
    %2208 = vmatprep.subr.bf16.mxu0 0
    %2209 = vmatpush1.bf16.msra.mxu0 %v1973
    %2210 = vmatprep.subr.bf16.mxu0 0
    %2211 = vmatpush1.bf16.msra.mxu0 %v1974
    %2212 = vmatprep.subr.bf16.mxu0 0
    %2213 = vmatpush1.bf16.msra.mxu0 %v1975
    %2214 = vmatprep.subr.bf16.mxu0 0
    %2215 = vmatpush1.bf16.msra.mxu0 %v1976
    %2216 = vmatprep.subr.bf16.mxu0 0
    %2217 = vmatpush1.bf16.msra.mxu0 %v1977
    %2218 = vmatprep.subr.bf16.mxu0 0
    %2219 = vmatpush1.bf16.msra.mxu0 %v1978
    %2220 = vmatprep.mubr.bf16.mxu0 %v1554
    %2221 = vmatmul.mubr.bf16.gmra.mrb[0].mxu0 %v1553
    %v2222 = vpop.f32.mrb[0].mxu0
    %v2223 = vadd.f32 %v2126, %v2222
    %v2224 = vpop.f32.mrb[0].mxu0
    %v2225 = vpop.f32.mrb[0].mxu0
    %v2226 = vadd.f32 %v2129, %v2225
    %v2227 = vpop.f32.mrb[0].mxu0
    %2228 = vmatprep.mubr.bf16.mxu0 %v1560
    %2229 = vmatmul.mubr.bf16.gmra.mrb[0].mxu0 %v1559
    %v2230 = vpop.f32.mrb[0].mxu0
    %v2231 = vadd.f32 %v2134, %v2230
    %v2232 = vpop.f32.mrb[0].mxu0
    %v2233 = vpop.f32.mrb[0].mxu0
    %v2234 = vadd.f32 %v2137, %v2233
    %v2235 = vpop.f32.mrb[0].mxu0
    %2236 = vmatprep.mubr.bf16.mxu0 %v1566
    %2237 = vmatmul.mubr.bf16.gmra.mrb[0].mxu0 %v1565
    %v2238 = vpop.f32.mrb[0].mxu0
    %v2239 = vadd.f32 %v2142, %v2238
    %v2240 = vpop.f32.mrb[0].mxu0
    %v2241 = vpop.f32.mrb[0].mxu0
    %v2242 = vadd.f32 %v2145, %v2241
    %v2243 = vpop.f32.mrb[0].mxu0
    %2244 = vmatprep.mubr.bf16.mxu0 %v1572
    %2245 = vmatmul.mubr.bf16.gmra.mrb[0].mxu0 %v1571
    %v2246 = vpop.f32.mrb[0].mxu0
    %v2247 = vadd.f32 %v2150, %v2246
    %v2248 = vpop.f32.mrb[0].mxu0
    %v2249 = vpop.f32.mrb[0].mxu0
    %v2250 = vadd.f32 %v2153, %v2249
    %v2251 = vpop.f32.mrb[0].mxu0
    %2252 = vmatprep.mubr.bf16.mxu0 %v1581
    %2253 = vmatmul.mubr.bf16.gmra.mrb[0].mxu0 %v1580
    %v2254 = vpop.f32.mrb[0].mxu0
    %v2255 = vadd.f32 %v2158, %v2254
    %v2256 = vpop.f32.mrb[0].mxu0
    %v2257 = vpop.f32.mrb[0].mxu0
    %v2258 = vadd.f32 %v2161, %v2257
    %v2259 = vpop.f32.mrb[0].mxu0
    %2260 = vmatprep.mubr.bf16.mxu0 %v1587
    %2261 = vmatmul.mubr.bf16.gmra.mrb[0].mxu0 %v1586
    %v2262 = vpop.f32.mrb[0].mxu0
    %v2263 = vadd.f32 %v2166, %v2262
    %v2264 = vpop.f32.mrb[0].mxu0
    %v2265 = vpop.f32.mrb[0].mxu0
    %v2266 = vadd.f32 %v2169, %v2265
    %v2267 = vpop.f32.mrb[0].mxu0
    %2268 = vmatprep.mubr.bf16.mxu0 %v1593
    %2269 = vmatmul.mubr.bf16.gmra.mrb[0].mxu0 %v1592
    %v2270 = vpop.f32.mrb[0].mxu0
    %v2271 = vadd.f32 %v2174, %v2270
    %v2272 = vpop.f32.mrb[0].mxu0
    %v2273 = vpop.f32.mrb[0].mxu0
    %v2274 = vadd.f32 %v2177, %v2273
    %v2275 = vpop.f32.mrb[0].mxu0
    %2276 = vmatprep.mubr.bf16.mxu0 %v1599
    %2277 = vmatmul.mubr.bf16.gmra.mrb[0].mxu0 %v1598
    %v2278 = vpop.f32.mrb[0].mxu0
    %v2279 = vadd.f32 %v2182, %v2278
    %v2280 = vpop.f32.mrb[0].mxu0
    %v2281 = vpop.f32.mrb[0].mxu0
    %v2282 = vadd.f32 %v2185, %v2281
    %v2283 = vpop.f32.mrb[0].mxu0
    %2284 = vdwg.mxu0
    %2285 = vmatprep.subr.bf16.mxu0 0
    %2286 = vmatpush1.bf16.msra.mxu0 %v1979
    %2287 = vmatprep.subr.bf16.mxu0 0
    %2288 = vmatpush1.bf16.msra.mxu0 %v1980
    %2289 = vmatprep.subr.bf16.mxu0 0
    %2290 = vmatpush1.bf16.msra.mxu0 %v1981
    %2291 = vmatprep.subr.bf16.mxu0 0
    %2292 = vmatpush1.bf16.msra.mxu0 %v1982
    %2293 = vmatprep.subr.bf16.mxu0 0
    %2294 = vmatpush1.bf16.msra.mxu0 %v1983
    %2295 = vmatprep.subr.bf16.mxu0 0
    %2296 = vmatpush1.bf16.msra.mxu0 %v1984
    %2297 = vmatprep.subr.bf16.mxu0 0
    %2298 = vmatpush1.bf16.msra.mxu0 %v1985
    %2299 = vmatprep.subr.bf16.mxu0 0
    %2300 = vmatpush1.bf16.msra.mxu0 %v1986
    %2301 = vmatprep.subr.bf16.mxu0 0
    %2302 = vmatpush1.bf16.msra.mxu0 %v1987
    %2303 = vmatprep.subr.bf16.mxu0 0
    %2304 = vmatpush1.bf16.msra.mxu0 %v1988
    %2305 = vmatprep.subr.bf16.mxu0 0
    %2306 = vmatpush1.bf16.msra.mxu0 %v1989
    %2307 = vmatprep.subr.bf16.mxu0 0
    %2308 = vmatpush1.bf16.msra.mxu0 %v1990
    %2309 = vmatprep.subr.bf16.mxu0 0
    %2310 = vmatpush1.bf16.msra.mxu0 %v1991
    %2311 = vmatprep.subr.bf16.mxu0 0
    %2312 = vmatpush1.bf16.msra.mxu0 %v1992
    %2313 = vmatprep.subr.bf16.mxu0 0
    %2314 = vmatpush1.bf16.msra.mxu0 %v1993
    %2315 = vmatprep.subr.bf16.mxu0 0
    %2316 = vmatpush1.bf16.msra.mxu0 %v1994
    %2317 = vmatprep.mubr.bf16.mxu0 %v1556
    %2318 = vmatmul.mubr.bf16.gmra.mrb[0].mxu0 %v1555
    %v2319 = vpop.f32.mrb[0].mxu0
    %v2320 = vadd.f32 %v2223, %v2319
    %v2321 = vpop.f32.mrb[0].mxu0
    %v2322 = vpop.f32.mrb[0].mxu0
    %v2323 = vadd.f32 %v2226, %v2322
    %v2324 = vpop.f32.mrb[0].mxu0
    %2325 = vmatprep.mubr.bf16.mxu0 %v1562
    %2326 = vmatmul.mubr.bf16.gmra.mrb[0].mxu0 %v1561
    %v2327 = vpop.f32.mrb[0].mxu0
    %v2328 = vadd.f32 %v2231, %v2327
    %v2329 = vpop.f32.mrb[0].mxu0
    %v2330 = vpop.f32.mrb[0].mxu0
    %v2331 = vadd.f32 %v2234, %v2330
    %v2332 = vpop.f32.mrb[0].mxu0
    %2333 = vmatprep.mubr.bf16.mxu0 %v1568
    %2334 = vmatmul.mubr.bf16.gmra.mrb[0].mxu0 %v1567
    %v2335 = vpop.f32.mrb[0].mxu0
    %v2336 = vadd.f32 %v2239, %v2335
    %v2337 = vpop.f32.mrb[0].mxu0
    %v2338 = vpop.f32.mrb[0].mxu0
    %v2339 = vadd.f32 %v2242, %v2338
    %v2340 = vpop.f32.mrb[0].mxu0
    %2341 = vmatprep.mubr.bf16.mxu0 %v1574
    %2342 = vmatmul.mubr.bf16.gmra.mrb[0].mxu0 %v1573
    %v2343 = vpop.f32.mrb[0].mxu0
    %v2344 = vadd.f32 %v2247, %v2343
    %v2345 = vpop.f32.mrb[0].mxu0
    %v2346 = vpop.f32.mrb[0].mxu0
    %v2347 = vadd.f32 %v2250, %v2346
    %v2348 = vpop.f32.mrb[0].mxu0
    %2349 = vmatprep.mubr.bf16.mxu0 %v1583
    %2350 = vmatmul.mubr.bf16.gmra.mrb[0].mxu0 %v1582
    %v2351 = vpop.f32.mrb[0].mxu0
    %v2352 = vadd.f32 %v2255, %v2351
    %v2353 = vpop.f32.mrb[0].mxu0
    %v2354 = vpop.f32.mrb[0].mxu0
    %v2355 = vadd.f32 %v2258, %v2354
    %v2356 = vpop.f32.mrb[0].mxu0
    %2357 = vmatprep.mubr.bf16.mxu0 %v1589
    %2358 = vmatmul.mubr.bf16.gmra.mrb[0].mxu0 %v1588
    %v2359 = vpop.f32.mrb[0].mxu0
    %v2360 = vadd.f32 %v2263, %v2359
    %v2361 = vpop.f32.mrb[0].mxu0
    %v2362 = vpop.f32.mrb[0].mxu0
    %v2363 = vadd.f32 %v2266, %v2362
    %v2364 = vpop.f32.mrb[0].mxu0
    %2365 = vmatprep.mubr.bf16.mxu0 %v1595
    %2366 = vmatmul.mubr.bf16.gmra.mrb[0].mxu0 %v1594
    %v2367 = vpop.f32.mrb[0].mxu0
    %v2368 = vadd.f32 %v2271, %v2367
    %v2369 = vpop.f32.mrb[0].mxu0
    %v2370 = vpop.f32.mrb[0].mxu0
    %v2371 = vadd.f32 %v2274, %v2370
    %v2372 = vpop.f32.mrb[0].mxu0
    %2373 = vmatprep.mubr.bf16.mxu0 %v1601
    %2374 = vmatmul.mubr.bf16.gmra.mrb[0].mxu0 %v1600
    %v2375 = vpop.f32.mrb[0].mxu0
    %v2376 = vadd.f32 %v2279, %v2375
    %v2377 = vpop.f32.mrb[0].mxu0
    %v2378 = vpop.f32.mrb[0].mxu0
    %v2379 = vadd.f32 %v2282, %v2378
    %v2380 = vpop.f32.mrb[0].mxu0
    %2381 = vdwg.mxu0
    %2382 = vmatprep.subr.bf16.mxu0 0
    %2383 = vmatpush1.bf16.msra.mxu0 %v1995
    %2384 = vmatprep.subr.bf16.mxu0 0
    %2385 = vmatpush1.bf16.msra.mxu0 %v1996
    %2386 = vmatprep.subr.bf16.mxu0 0
    %2387 = vmatpush1.bf16.msra.mxu0 %v1997
    %2388 = vmatprep.subr.bf16.mxu0 0
    %2389 = vmatpush1.bf16.msra.mxu0 %v1998
    %2390 = vmatprep.subr.bf16.mxu0 0
    %2391 = vmatpush1.bf16.msra.mxu0 %v1999
    %2392 = vmatprep.subr.bf16.mxu0 0
    %2393 = vmatpush1.bf16.msra.mxu0 %v2000
    %2394 = vmatprep.subr.bf16.mxu0 0
    %2395 = vmatpush1.bf16.msra.mxu0 %v2001
    %2396 = vmatprep.subr.bf16.mxu0 0
    %2397 = vmatpush1.bf16.msra.mxu0 %v2002
    %2398 = vmatprep.subr.bf16.mxu0 0
    %2399 = vmatpush1.bf16.msra.mxu0 %v2003
    %2400 = vmatprep.subr.bf16.mxu0 0
    %2401 = vmatpush1.bf16.msra.mxu0 %v2004
    %2402 = vmatprep.subr.bf16.mxu0 0
    %2403 = vmatpush1.bf16.msra.mxu0 %v2005
    %2404 = vmatprep.subr.bf16.mxu0 0
    %2405 = vmatpush1.bf16.msra.mxu0 %v2006
    %2406 = vmatprep.subr.bf16.mxu0 0
    %2407 = vmatpush1.bf16.msra.mxu0 %v2007
    %2408 = vmatprep.subr.bf16.mxu0 0
    %2409 = vmatpush1.bf16.msra.mxu0 %v2008
    %2410 = vmatprep.subr.bf16.mxu0 0
    %2411 = vmatpush1.bf16.msra.mxu0 %v2009
    %2412 = vmatprep.subr.bf16.mxu0 0
    %2413 = vmatpush1.bf16.msra.mxu0 %v2010
    %2414 = vmatprep.mubr.bf16.mxu0 %v1558
    %2415 = vmatmul.mubr.bf16.gmra.mrb[0].mxu0 %v1557
    %v2416 = vpop.f32.mrb[0].mxu0
    %v2417 = vadd.f32 %v2320, %v2416
    %v2418 = vpop.f32.mrb[0].mxu0
    %v2419 = vpop.f32.mrb[0].mxu0
    %v2420 = vadd.f32 %v2323, %v2419
    %v2421 = vpop.f32.mrb[0].mxu0
    %2422 = vmatprep.mubr.bf16.mxu0 %v1564
    %2423 = vmatmul.mubr.bf16.gmra.mrb[0].mxu0 %v1563
    %v2424 = vpop.f32.mrb[0].mxu0
    %v2425 = vadd.f32 %v2328, %v2424
    %v2426 = vpop.f32.mrb[0].mxu0
    %v2427 = vpop.f32.mrb[0].mxu0
    %v2428 = vadd.f32 %v2331, %v2427
    %v2429 = vpop.f32.mrb[0].mxu0
    %2430 = vmatprep.mubr.bf16.mxu0 %v1570
    %2431 = vmatmul.mubr.bf16.gmra.mrb[0].mxu0 %v1569
    %v2432 = vpop.f32.mrb[0].mxu0
    %v2433 = vadd.f32 %v2336, %v2432
    %v2434 = vpop.f32.mrb[0].mxu0
    %v2435 = vpop.f32.mrb[0].mxu0
    %v2436 = vadd.f32 %v2339, %v2435
    %v2437 = vpop.f32.mrb[0].mxu0
    %2438 = vmatprep.mubr.bf16.mxu0 %v1576
    %2439 = vmatmul.mubr.bf16.gmra.mrb[0].mxu0 %v1575
    %v2440 = vpop.f32.mrb[0].mxu0
    %v2441 = vadd.f32 %v2344, %v2440
    %v2442 = vpop.f32.mrb[0].mxu0
    %v2443 = vpop.f32.mrb[0].mxu0
    %v2444 = vadd.f32 %v2347, %v2443
    %v2445 = vpop.f32.mrb[0].mxu0
    %2446 = vmatprep.mubr.bf16.mxu0 %v1585
    %2447 = vmatmul.mubr.bf16.gmra.mrb[0].mxu0 %v1584
    %v2448 = vpop.f32.mrb[0].mxu0
    %v2449 = vadd.f32 %v2352, %v2448
    %v2450 = vpop.f32.mrb[0].mxu0
    %v2451 = vpop.f32.mrb[0].mxu0
    %v2452 = vadd.f32 %v2355, %v2451
    %v2453 = vpop.f32.mrb[0].mxu0
    %2454 = vmatprep.mubr.bf16.mxu0 %v1591
    %2455 = vmatmul.mubr.bf16.gmra.mrb[0].mxu0 %v1590
    %v2456 = vpop.f32.mrb[0].mxu0
    %v2457 = vadd.f32 %v2360, %v2456
    %v2458 = vpop.f32.mrb[0].mxu0
    %v2459 = vpop.f32.mrb[0].mxu0
    %v2460 = vadd.f32 %v2363, %v2459
    %v2461 = vpop.f32.mrb[0].mxu0
    %2462 = vmatprep.mubr.bf16.mxu0 %v1597
    %2463 = vmatmul.mubr.bf16.gmra.mrb[0].mxu0 %v1596
    %v2464 = vpop.f32.mrb[0].mxu0
    %v2465 = vadd.f32 %v2368, %v2464
    %v2466 = vpop.f32.mrb[0].mxu0
    %v2467 = vpop.f32.mrb[0].mxu0
    %v2468 = vadd.f32 %v2371, %v2467
    %v2469 = vpop.f32.mrb[0].mxu0
    %2470 = vmatprep.mubr.bf16.mxu0 %v1603
    %2471 = vmatmul.mubr.bf16.gmra.mrb[0].mxu0 %v1602
    %v2472 = vpop.f32.mrb[0].mxu0
    %v2473 = vadd.f32 %v2376, %v2472
    %v2474 = vpop.f32.mrb[0].mxu0
    %v2475 = vpop.f32.mrb[0].mxu0
    %v2476 = vadd.f32 %v2379, %v2475
    %v2477 = vpop.f32.mrb[0].mxu0
    %2478 = vdwg.mxu0
    %2479 = vmatprep.subr.bf16.mxu0 0
    %2480 = vmatpush1.bf16.msra.mxu0 %v2011
    %2481 = vmatprep.subr.bf16.mxu0 0
    %2482 = vmatpush1.bf16.msra.mxu0 %v2012
    %2483 = vmatprep.subr.bf16.mxu0 0
    %2484 = vmatpush1.bf16.msra.mxu0 %v2013
    %2485 = vmatprep.subr.bf16.mxu0 0
    %2486 = vmatpush1.bf16.msra.mxu0 %v2014
    %2487 = vmatprep.subr.bf16.mxu0 0
    %2488 = vmatpush1.bf16.msra.mxu0 %v2015
    %2489 = vmatprep.subr.bf16.mxu0 0
    %2490 = vmatpush1.bf16.msra.mxu0 %v2016
    %2491 = vmatprep.subr.bf16.mxu0 0
    %2492 = vmatpush1.bf16.msra.mxu0 %v2017
    %2493 = vmatprep.subr.bf16.mxu0 0
    %2494 = vmatpush1.bf16.msra.mxu0 %v2018
    %2495 = vmatprep.subr.bf16.mxu0 0
    %2496 = vmatpush1.bf16.msra.mxu0 0
    %2497 = vmatprep.subr.bf16.mxu0 0
    %2498 = vmatpush1.bf16.msra.mxu0 0
    %2499 = vmatprep.subr.bf16.mxu0 0
    %2500 = vmatpush1.bf16.msra.mxu0 0
    %2501 = vmatprep.subr.bf16.mxu0 0
    %2502 = vmatpush1.bf16.msra.mxu0 0
    %2503 = vmatprep.subr.bf16.mxu0 0
    %2504 = vmatpush1.bf16.msra.mxu0 0
    %2505 = vmatprep.subr.bf16.mxu0 0
    %2506 = vmatpush1.bf16.msra.mxu0 0
    %2507 = vmatprep.subr.bf16.mxu0 0
    %2508 = vmatpush1.bf16.msra.mxu0 0
    %2509 = vmatprep.subr.bf16.mxu0 0
    %2510 = vmatpush1.bf16.msra.mxu0 0
    %2511 = vmatprep.mubr.bf16.mxu0 0
    %2512 = vmatmul.mubr.bf16.gmra.mrb[0].mxu0 %v1559
    %v2513 = vpop.f32.mrb[0].mxu0
    %v2514 = vadd.f32 %v2417, %v2513
    %v2515 = vpop.f32.mrb[0].mxu0
    %v2516 = vpop.f32.mrb[0].mxu0
    %v2517 = vadd.f32 %v2420, %v2516
    %v2518 = vpop.f32.mrb[0].mxu0
    %2519 = vmatprep.mubr.bf16.mxu0 0
    %2520 = vmatmul.mubr.bf16.gmra.mrb[0].mxu0 %v1565
    %v2521 = vpop.f32.mrb[0].mxu0
    %v2522 = vadd.f32 %v2425, %v2521
    %v2523 = vpop.f32.mrb[0].mxu0
    %v2524 = vpop.f32.mrb[0].mxu0
    %v2525 = vadd.f32 %v2428, %v2524
    %v2526 = vpop.f32.mrb[0].mxu0
    %2527 = vmatprep.mubr.bf16.mxu0 0
    %2528 = vmatmul.mubr.bf16.gmra.mrb[0].mxu0 %v1571
    %v2529 = vpop.f32.mrb[0].mxu0
    %v2530 = vadd.f32 %v2433, %v2529
    %v2531 = vpop.f32.mrb[0].mxu0
    %v2532 = vpop.f32.mrb[0].mxu0
    %v2533 = vadd.f32 %v2436, %v2532
    %v2534 = vpop.f32.mrb[0].mxu0
    %2535 = vmatprep.mubr.bf16.mxu0 0
    %2536 = vmatmul.mubr.bf16.gmra.mrb[0].mxu0 %v1577
    %v2537 = vpop.f32.mrb[0].mxu0
    %v2538 = vadd.f32 %v2441, %v2537
    %v2539 = vpop.f32.mrb[0].mxu0
    %v2540 = vpop.f32.mrb[0].mxu0
    %v2541 = vadd.f32 %v2444, %v2540
    %v2542 = vpop.f32.mrb[0].mxu0
    %2543 = vmatprep.mubr.bf16.mxu0 0
    %2544 = vmatmul.mubr.bf16.gmra.mrb[0].mxu0 %v1586
    %v2545 = vpop.f32.mrb[0].mxu0
    %v2546 = vadd.f32 %v2449, %v2545
    %v2547 = vpop.f32.mrb[0].mxu0
    %v2548 = vpop.f32.mrb[0].mxu0
    %v2549 = vadd.f32 %v2452, %v2548
    %v2550 = vpop.f32.mrb[0].mxu0
    %2551 = vmatprep.mubr.bf16.mxu0 0
    %2552 = vmatmul.mubr.bf16.gmra.mrb[0].mxu0 %v1592
    %v2553 = vpop.f32.mrb[0].mxu0
    %v2554 = vadd.f32 %v2457, %v2553
    %v2555 = vpop.f32.mrb[0].mxu0
    %v2556 = vpop.f32.mrb[0].mxu0
    %v2557 = vadd.f32 %v2460, %v2556
    %v2558 = vpop.f32.mrb[0].mxu0
    %2559 = vmatprep.mubr.bf16.mxu0 0
    %2560 = vmatmul.mubr.bf16.gmra.mrb[0].mxu0 %v1598
    %v2561 = vpop.f32.mrb[0].mxu0
    %v2562 = vadd.f32 %v2465, %v2561
    %v2563 = vpop.f32.mrb[0].mxu0
    %v2564 = vpop.f32.mrb[0].mxu0
    %v2565 = vadd.f32 %v2468, %v2564
    %v2566 = vpop.f32.mrb[0].mxu0
    %2567 = vmatprep.mubr.bf16.mxu0 0
    %2568 = vmatmul.mubr.bf16.gmra.mrb[0].mxu0 %v1604
    %v2569 = vpop.f32.mrb[0].mxu0
    %v2570 = vadd.f32 %v2473, %v2569
    %v2571 = vpop.f32.mrb[0].mxu0
    %v2572 = vpop.f32.mrb[0].mxu0
    %v2573 = vadd.f32 %v2476, %v2572
    %v2574 = vpop.f32.mrb[0].mxu0
    %2575 = vdwg.mxu0
    %v2576 = vpack.c.bf16 %v2514, %v2514
    %v2577 = vpack.c.bf16 %v2517, %v2517
    %v2578 = vpack.c.bf16 %v2522, %v2522
    %v2579 = vpack.c.bf16 %v2525, %v2525
    %v2580 = vpack.c.bf16 %v2530, %v2530
    %v2581 = vpack.c.bf16 %v2533, %v2533
    %v2582 = vpack.c.bf16 %v2538, %v2538
    %v2583 = vpack.c.bf16 %v2541, %v2541
    %v2584 = vpack.c.bf16 %v2546, %v2546
    %v2585 = vpack.c.bf16 %v2549, %v2549
    %v2586 = vpack.c.bf16 %v2554, %v2554
    %v2587 = vpack.c.bf16 %v2557, %v2557
    %v2588 = vpack.c.bf16 %v2562, %v2562
    %v2589 = vpack.c.bf16 %v2565, %v2565
    %v2590 = vpack.c.bf16 %v2570, %v2570
    %v2591 = vpack.c.bf16 %v2573, %v2573
    %2592 = vst [vmem:[#allocation13] sm:$0xf] %v2576
    %2593 = vst [vmem:[#allocation13 + $0x4] sm:$0xf] %v2577
    %2594 = vst [vmem:[#allocation13 + $0x8] sm:$0xf] %v2578
    %2595 = vst [vmem:[#allocation13 + $0xc] sm:$0xf] %v2579
    %2596 = vst [vmem:[#allocation13 + $0x10] sm:$0xf] %v2580
    %2597 = vst [vmem:[#allocation13 + $0x14] sm:$0xf] %v2581
    %2598 = vst [vmem:[#allocation13 + $0x18] sm:$0xf] %v2582
    %2599 = vst [vmem:[#allocation13 + $0x1c] sm:$0xf] %v2583
    %2600 = vst [vmem:[#allocation13 + $0x20] sm:$0xf] %v2584
    %2601 = vst [vmem:[#allocation13 + $0x24] sm:$0xf] %v2585
    %2602 = vst [vmem:[#allocation13 + $0x28] sm:$0xf] %v2586
    %2603 = vst [vmem:[#allocation13 + $0x2c] sm:$0xf] %v2587
    %2604 = vst [vmem:[#allocation13 + $0x30] sm:$0xf] %v2588
    %2605 = vst [vmem:[#allocation13 + $0x34] sm:$0xf] %v2589
    %2606 = vst [vmem:[#allocation13 + $0x38] sm:$0xf] %v2590
    %2607 = vst [vmem:[#allocation13 + $0x3c] sm:$0xf] %v2591
    // Predicated region
    $region50: #{tpu_custom_call.1} parent=1 // pred_check
      _
    $region51: #{tpu_custom_call.1} parent=1 // pred_check_branch
      %2609 = sbr.rel (0) target = $region53
    $region52: #{tpu_custom_call.1} parent=1 // pred_region
      %s2611 = ssub.s32 1024, 1024
      %2612 = vsyncadd [#allocation4], %s2611
      %s2613 = sshll.u32 [#allocation13], 4
      %s2614 = int_to_ptr.vmem [resolvable:$true] %s2613
      %2619 = dma.vmem_to_hbm [thread:$0]  %s2614, 1024, %s6, [#allocation4], 64, 64, 4
    $region53: #{tpu_custom_call.1} parent=1 // pred_fallthru
      _
    // Predicated region
    $region54: #{tpu_custom_call.1} parent=1 // pred_check
      _
    $region55: #{tpu_custom_call.1} parent=1 // pred_check_branch
      %2621 = sbr.rel (0) target = $region57
    $region56: #{tpu_custom_call.1} parent=1 // pred_region
      %2622 = dma.done [#allocation4], 1024
    $region57: #{tpu_custom_call.1} parent=1 // pred_fallthru
      _
    %2623 = vsyncpa [#allocation3], 1
    %2624 = vsyncpa [#allocation6], 1
    %2625 = vsyncpa [#allocation9], 1
    %2626 = vsyncpa [#allocation12], 1
    %2627 = vsyncpa [#allocation4], 1

</llo_original>
